<compile_context>
chip_gen: v5e
topology: v5e:2x2
jax: 0.10.0
libtpu: 0.0.40
codegen_flags: <defaults>
</compile_context>

<pallas_src>
import functools

import jax
import jax.numpy as jnp
import numpy as np
from jax.experimental import pallas as pl
from jax.experimental.pallas import tpu as pltpu


def _double_conv_kernel(x_ref, mask_ref, wb1_ref, b1_ref, wb2_ref, b2_ref,
                        o_ref, h1_ref):
    # x_ref   : (M, W*Cin)  bf16, M = B*(H+2); per image: [0-halo, H rows, 0-halo]
    # mask_ref: (M, 1)      f32, 1.0 on image rows, 0.0 on halo rows
    # wb1_ref : (3, W*Cin,  W*Cmid) bf16 banded conv1 weights (BN scale folded)
    # wb2_ref : (3, W*Cmid, W*Cout) bf16 banded conv2 weights (BN scale folded)
    # b*_ref  : (1, W*C)    f32 folded-BN bias tiled along W
    # o_ref   : (M, W*Cout) f32; row s = output centred at padded row s+1
    #           (per-image rows [0, H) are valid; the rest is discarded upstream)
    # h1_ref  : (M, W*Cmid) bf16 scratch: ReLU(conv1+BN) in the padded layout
    m = x_ref.shape[0]
    mo = m - 2                      # rows owning a full 3-row window
    wcm = wb1_ref.shape[2]
    wco = wb2_ref.shape[2]

    # ---- conv1: 3 bf16 MXU matmuls over dy-shifted row windows, f32 acc ----
    acc1 = jnp.zeros((mo, wcm), jnp.float32)
    for dy in range(3):
        acc1 = acc1 + jax.lax.dot_general(
            x_ref[dy:dy + mo, :], wb1_ref[dy],
            (((1,), (0,)), ((), ())), preferred_element_type=jnp.float32)

    # Folded-BN bias + ReLU in f32.  acc1 row s is centred at padded row s+1;
    # rows centred on per-image halo rows are garbage and are masked to zero so
    # they become conv2's H-direction zero padding.
    h1 = jnp.maximum(acc1 + b1_ref[...], 0.0) * mask_ref[1:m - 1, :]
    h1 = h1.astype(h1_ref.dtype)

    # Padded-layout h1: rows 0 / m-1 are always halo rows, the interior is acc1
    # shifted down by one row.
    # TODO(synk): at larger H tiles replace this store+reload with pltpu.roll on
    # the in-vreg h1 (XLU slot) to save the VMEM round trip.
    h1_ref[0:1, :] = jnp.zeros((1, wcm), h1_ref.dtype)
    h1_ref[m - 1:m, :] = jnp.zeros((1, wcm), h1_ref.dtype)
    h1_ref[1:m - 1, :] = h1

    # ---- conv2: 3 bf16 MXU matmuls over the padded h1, f32 acc ----
    acc2 = jnp.zeros((mo, wco), jnp.float32)
    for dy in range(3):
        acc2 = acc2 + jax.lax.dot_general(
            h1_ref[dy:dy + mo, :], wb2_ref[dy],
            (((1,), (0,)), ((), ())), preferred_element_type=jnp.float32)

    out = jnp.maximum(acc2 + b2_ref[...], 0.0)
    o_ref[0:mo, :] = out.astype(o_ref.dtype)
    o_ref[mo:m, :] = jnp.zeros((2, wco), o_ref.dtype)   # keep block fully written


def _banded_weights(w, width):
    """3x3 SAME conv (HWIO, BN scale folded) -> (3, W*Ci, W*Co) banded matmuls.

    big[dy, q*Ci + c, x*Co + o] = w[dy, q - x + 1, c, o] if 0 <= q-x+1 <= 2
    else 0, so the W-direction zero padding is encoded in the band structure.
    """
    kh, kw, ci, co = w.shape
    q = jnp.arange(width)[None, :, None]
    x = jnp.arange(width)[None, None, :]
    dx = jnp.arange(kw)[:, None, None]
    sel = (q == x + dx - 1).astype(w.dtype)            # (kw, W, W) 0/1 selector
    big = jnp.einsum('dqx,kdco->kqcxo', sel, w)        # (kh, W, Ci, W, Co)
    return big.reshape(kh, width * ci, width * co)


def _fold_bn(gamma, beta, mean, var, eps):
    scale = gamma * jax.lax.rsqrt(var + eps)
    return scale, beta - mean * scale


def double_conv_forward(x_nchw, w1, bn1, w2, bn2, *, eps=1e-5,
                        images_per_block=8):
    """DoubleConv.forward (eval-mode BN): x (N,Cin,H,W) -> (N,Cout,H,W).

    w1: (3,3,Cin,Cmid) HWIO, w2: (3,3,Cmid,Cout) HWIO (bias-free convs).
    bn*: (gamma, beta, running_mean, running_var).
    """
    n, cin, h, w = x_nchw.shape
    cmid, cout = w1.shape[3], w2.shape[3]
    hp = h + 2

    b = min(images_per_block, n)
    assert n % b == 0, "batch must divide into image blocks"
    m = b * hp
    assert m % 8 == 0 or b == n, "block rows must be sublane-aligned"

    # Fold eval-mode BatchNorm into the conv weights (conv is linear in w).
    # TODO(synk): train-mode batch statistics are not reproduced.
    s1, bias1 = _fold_bn(*bn1, eps)
    s2, bias2 = _fold_bn(*bn2, eps)
    w1f = w1.astype(jnp.float32) * s1[None, None, None, :]
    w2f = w2.astype(jnp.float32) * s2[None, None, None, :]

    # bf16 MXU operands (f32 accumulation happens in-kernel); f32 biases.
    wb1 = _banded_weights(w1f, w).astype(jnp.bfloat16)     # (3, W*Cin,  W*Cmid)
    wb2 = _banded_weights(w2f, w).astype(jnp.bfloat16)     # (3, W*Cmid, W*Cout)
    bb1 = jnp.tile(bias1.astype(jnp.float32), w).reshape(1, w * cmid)
    bb2 = jnp.tile(bias2.astype(jnp.float32), w).reshape(1, w * cout)

    # Lane-dense, H-halo-padded input slab: (N*(H+2), W*Cin), bf16.
    x_rows = jnp.transpose(x_nchw, (0, 2, 3, 1)).reshape(n, h, w * cin)
    x_rows = jnp.pad(x_rows, ((0, 0), (1, 1), (0, 0)))
    x_flat = x_rows.reshape(n * hp, w * cin).astype(jnp.bfloat16)

    # Interior-row mask (same for every block): 1 on image rows, 0 on halos.
    rows = jnp.arange(m) % hp
    mask = jnp.logical_and(rows >= 1, rows <= h).astype(jnp.float32)
    mask = mask.reshape(m, 1)

    # TODO(synk): at real UNet widths, x-tile the banded weights (they grow
    # O(W^2)), tile H against the per-generation VMEM budget (64 MiB v7x vs.
    # 128 MiB v5e/v6e, raising vmem_limit_bytes explicitly), and single-buffer
    # the grid-invariant weight operands (pl.Buffered(1)); whole-W bands are
    # only appropriate at these small demo shapes.
    out_flat = pl.pallas_call(
        _double_conv_kernel,
        out_shape=jax.ShapeDtypeStruct((n * hp, w * cout), jnp.float32),
        grid_spec=pltpu.PrefetchScalarGridSpec(
            num_scalar_prefetch=0,
            grid=(n // b,),
            in_specs=[
                pl.BlockSpec((m, w * cin), lambda g: (g, 0)),
                pl.BlockSpec((m, 1), lambda g: (0, 0)),
                pl.BlockSpec((3, w * cin, w * cmid), lambda g: (0, 0, 0)),
                pl.BlockSpec((1, w * cmid), lambda g: (0, 0)),
                pl.BlockSpec((3, w * cmid, w * cout), lambda g: (0, 0, 0)),
                pl.BlockSpec((1, w * cout), lambda g: (0, 0)),
            ],
            out_specs=pl.BlockSpec((m, w * cout), lambda g: (g, 0)),
            scratch_shapes=[pltpu.VMEM((m, w * cmid), jnp.bfloat16)],
        ),
        compiler_params=pltpu.CompilerParams(
            dimension_semantics=("parallel",)),
    )(x_flat, mask, wb1, bb1, wb2, bb2)

    # TODO(synk): chained DoubleConv blocks should consume this lane-dense
    # (N, H, W*Cout) layout directly instead of paying the NCHW transpose.
    out = out_flat.reshape(n, hp, w, cout)[:, :h]
    return jnp.transpose(out, (0, 3, 1, 2))


def _ref_forward(x_nchw, w1, bn1, w2, bn2, *, eps=1e-5):
    """Pure-JAX f32 reference with explicit eval-mode BatchNorm."""
    def conv(hh, ww):
        return jax.lax.conv_general_dilated(
            hh, ww, window_strides=(1, 1), padding="SAME",
            dimension_numbers=("NHWC", "HWIO", "NHWC"),
            precision=jax.lax.Precision.HIGHEST)

    def bn(hh, p):
        gamma, beta, mean, var = p
        return (hh - mean) * gamma * jax.lax.rsqrt(var + eps) + beta

    xh = jnp.transpose(x_nchw, (0, 2, 3, 1))
    h1 = jax.nn.relu(bn(conv(xh, w1), bn1))
    h2 = jax.nn.relu(bn(conv(h1, w2), bn2))
    return jnp.transpose(h2, (0, 3, 1, 2))


if __name__ == "__main__":
    # DoubleConv(in_channels=4, out_channels=8); mid_channels == out_channels.
    # Batch 16 so one grid step stacks 8 images (matmul M = 8*(16+2) = 144 rows,
    # filling the MXU) and the "parallel" batch axis has 2 blocks.
    n, cin, h, w = 16, 4, 16, 16
    cmid = cout = 8
    eps = 1e-5

    key = jax.random.PRNGKey(0)
    ks = jax.random.split(key, 11)
    x = jax.random.normal(ks[0], (n, cin, h, w), jnp.float32)

    # Synthetic parameters (HWIO conv weights, bias-free convs; eval-mode BN
    # running statistics).
    w1 = 0.2 * jax.random.normal(ks[1], (3, 3, cin, cmid), jnp.float32)
    w2 = 0.2 * jax.random.normal(ks[2], (3, 3, cmid, cout), jnp.float32)
    bn1 = (1.0 + 0.1 * jax.random.normal(ks[3], (cmid,), jnp.float32),
           0.1 * jax.random.normal(ks[4], (cmid,), jnp.float32),
           0.1 * jax.random.normal(ks[5], (cmid,), jnp.float32),
           0.5 + jax.random.uniform(ks[6], (cmid,), jnp.float32))
    bn2 = (1.0 + 0.1 * jax.random.normal(ks[7], (cout,), jnp.float32),
           0.1 * jax.random.normal(ks[8], (cout,), jnp.float32),
           0.1 * jax.random.normal(ks[9], (cout,), jnp.float32),
           0.5 + jax.random.uniform(ks[10], (cout,), jnp.float32))

    out = double_conv_forward(x, w1, bn1, w2, bn2, eps=eps)
    out = jax.block_until_ready(out)
    assert out.shape == (n, cout, h, w), out.shape

    ref = _ref_forward(x, w1, bn1, w2, bn2, eps=eps)
    # bf16 MXU operands with f32 accumulation: tolerance relaxed per review.
    np.testing.assert_allclose(np.asarray(out), np.asarray(ref),
                               atol=5e-2, rtol=5e-2)
    print("KERNEL_OK")
</pallas_src>

<mosaic_0001>
module attributes {stable_mosaic.version = 11 : i64} {
  func.func @_double_conv_kernel(%arg0: i32, %arg1: memref<144x64xbf16, #tpu.memory_space<vmem>>, %arg2: memref<144x1xf32, #tpu.memory_space<vmem>>, %arg3: memref<3x64x128xbf16, #tpu.memory_space<vmem>>, %arg4: memref<1x128xf32, #tpu.memory_space<vmem>>, %arg5: memref<3x128x128xbf16, #tpu.memory_space<vmem>>, %arg6: memref<1x128xf32, #tpu.memory_space<vmem>>, %arg7: memref<144x128xf32, #tpu.memory_space<vmem>>, %arg8: memref<144x128xbf16, #tpu.memory_space<vmem>>) attributes {dimension_semantics = [#tpu.dimension_semantics<parallel>], iteration_bounds = array<i64: 2>, scalar_prefetch = 0 : i64, scratch_operands = 1 : i64, tpu.core_type = #tpu.core_type<tc>, window_params = [{transform_indices = @transform_0, window_bounds = array<i64: 144, 64>}, {pipeline_mode = #tpu.pipeline_mode<synchronous>, transform_indices = @transform_1, window_bounds = array<i64: 144, 1>}, {pipeline_mode = #tpu.pipeline_mode<synchronous>, transform_indices = @transform_2, window_bounds = array<i64: 3, 64, 128>}, {pipeline_mode = #tpu.pipeline_mode<synchronous>, transform_indices = @transform_3, window_bounds = array<i64: 1, 128>}, {pipeline_mode = #tpu.pipeline_mode<synchronous>, transform_indices = @transform_4, window_bounds = array<i64: 3, 128, 128>}, {pipeline_mode = #tpu.pipeline_mode<synchronous>, transform_indices = @transform_5, window_bounds = array<i64: 1, 128>}, {transform_indices = @transform_6, window_bounds = array<i64: 144, 128>}]} {
    %cst = arith.constant 0.000000e+00 : f32
    %0 = vector.broadcast %cst : f32 to vector<142x128xf32>
    %c0 = arith.constant 0 : index
    %c0_0 = arith.constant 0 : index
    %1 = vector.load %arg1[%c0, %c0_0] : memref<144x64xbf16, #tpu.memory_space<vmem>>, vector<142x64xbf16>
    %c0_1 = arith.constant 0 : index
    %c0_2 = arith.constant 0 : index
    %c0_3 = arith.constant 0 : index
    %2 = vector.load %arg3[%c0_1, %c0_2, %c0_3] : memref<3x64x128xbf16, #tpu.memory_space<vmem>>, vector<1x64x128xbf16>
    %3 = vector.shape_cast %2 : vector<1x64x128xbf16> to vector<64x128xbf16>
    %cst_4 = arith.constant dense<0.000000e+00> : vector<142x128xf32>
    %4 = tpu.matmul %1, %3, %cst_4 {dimension_numbers = #tpu.dot_dimension_numbers<[1], [0], [0], [1], [0, 0, 1, 1], [], []>} : vector<142x64xbf16>, vector<64x128xbf16>, vector<142x128xf32> -> vector<142x128xf32>
    %5 = arith.addf %0, %4 : vector<142x128xf32>
    %c1 = arith.constant 1 : index
    %c0_5 = arith.constant 0 : index
    %6 = vector.load %arg1[%c1, %c0_5] : memref<144x64xbf16, #tpu.memory_space<vmem>>, vector<142x64xbf16>
    %c1_6 = arith.constant 1 : index
    %c0_7 = arith.constant 0 : index
    %c0_8 = arith.constant 0 : index
    %7 = vector.load %arg3[%c1_6, %c0_7, %c0_8] : memref<3x64x128xbf16, #tpu.memory_space<vmem>>, vector<1x64x128xbf16>
    %8 = vector.shape_cast %7 : vector<1x64x128xbf16> to vector<64x128xbf16>
    %cst_9 = arith.constant dense<0.000000e+00> : vector<142x128xf32>
    %9 = tpu.matmul %6, %8, %cst_9 {dimension_numbers = #tpu.dot_dimension_numbers<[1], [0], [0], [1], [0, 0, 1, 1], [], []>} : vector<142x64xbf16>, vector<64x128xbf16>, vector<142x128xf32> -> vector<142x128xf32>
    %10 = arith.addf %5, %9 : vector<142x128xf32>
    %c2 = arith.constant 2 : index
    %c0_10 = arith.constant 0 : index
    %11 = vector.load %arg1[%c2, %c0_10] : memref<144x64xbf16, #tpu.memory_space<vmem>>, vector<142x64xbf16>
    %c2_11 = arith.constant 2 : index
    %c0_12 = arith.constant 0 : index
    %c0_13 = arith.constant 0 : index
    %12 = vector.load %arg3[%c2_11, %c0_12, %c0_13] : memref<3x64x128xbf16, #tpu.memory_space<vmem>>, vector<1x64x128xbf16>
    %13 = vector.shape_cast %12 : vector<1x64x128xbf16> to vector<64x128xbf16>
    %cst_14 = arith.constant dense<0.000000e+00> : vector<142x128xf32>
    %14 = tpu.matmul %11, %13, %cst_14 {dimension_numbers = #tpu.dot_dimension_numbers<[1], [0], [0], [1], [0, 0, 1, 1], [], []>} : vector<142x64xbf16>, vector<64x128xbf16>, vector<142x128xf32> -> vector<142x128xf32>
    %15 = arith.addf %10, %14 : vector<142x128xf32>
    %c0_15 = arith.constant 0 : index
    %c0_16 = arith.constant 0 : index
    %16 = vector.load %arg4[%c0_15, %c0_16] : memref<1x128xf32, #tpu.memory_space<vmem>>, vector<1x128xf32>
    %17 = vector.broadcast %16 : vector<1x128xf32> to vector<142x128xf32>
    %18 = arith.addf %15, %17 : vector<142x128xf32>
    %cst_17 = arith.constant 0.000000e+00 : f32
    %19 = vector.broadcast %cst_17 : f32 to vector<142x128xf32>
    %20 = arith.maximumf %18, %19 : vector<142x128xf32>
    %c1_18 = arith.constant 1 : index
    %c0_19 = arith.constant 0 : index
    %21 = vector.load %arg2[%c1_18, %c0_19] : memref<144x1xf32, #tpu.memory_space<vmem>>, vector<142x1xf32>
    %22 = vector.broadcast %21 : vector<142x1xf32> to vector<142x128xf32>
    %23 = arith.mulf %20, %22 : vector<142x128xf32>
    %24 = arith.truncf %23 : vector<142x128xf32> to vector<142x128xbf16>
    %cst_20 = arith.constant 0.000000e+00 : bf16
    %25 = vector.broadcast %cst_20 : bf16 to vector<1x128xbf16>
    %c0_21 = arith.constant 0 : index
    %c0_22 = arith.constant 0 : index
    %26 = vector.load %arg8[%c0_21, %c0_22] : memref<144x128xbf16, #tpu.memory_space<vmem>>, vector<1x128xbf16>
    tpu.vector_store %arg8[%c0_21, %c0_22], %25 {strides = array<i32>} : memref<144x128xbf16, #tpu.memory_space<vmem>>, vector<1x128xbf16>,
    %cst_23 = arith.constant 0.000000e+00 : bf16
    %27 = vector.broadcast %cst_23 : bf16 to vector<1x128xbf16>
    %c143 = arith.constant 143 : index
    %c0_24 = arith.constant 0 : index
    %28 = vector.load %arg8[%c143, %c0_24] : memref<144x128xbf16, #tpu.memory_space<vmem>>, vector<1x128xbf16>
    tpu.vector_store %arg8[%c143, %c0_24], %27 {strides = array<i32>} : memref<144x128xbf16, #tpu.memory_space<vmem>>, vector<1x128xbf16>,
    %c1_25 = arith.constant 1 : index
    %c0_26 = arith.constant 0 : index
    %29 = vector.load %arg8[%c1_25, %c0_26] : memref<144x128xbf16, #tpu.memory_space<vmem>>, vector<142x128xbf16>
    tpu.vector_store %arg8[%c1_25, %c0_26], %24 {strides = array<i32>} : memref<144x128xbf16, #tpu.memory_space<vmem>>, vector<142x128xbf16>,
    %cst_27 = arith.constant 0.000000e+00 : f32
    %30 = vector.broadcast %cst_27 : f32 to vector<142x128xf32>
    %c0_28 = arith.constant 0 : index
    %c0_29 = arith.constant 0 : index
    %31 = vector.load %arg8[%c0_28, %c0_29] : memref<144x128xbf16, #tpu.memory_space<vmem>>, vector<142x128xbf16>
    %c0_30 = arith.constant 0 : index
    %c0_31 = arith.constant 0 : index
    %c0_32 = arith.constant 0 : index
    %32 = vector.load %arg5[%c0_30, %c0_31, %c0_32] : memref<3x128x128xbf16, #tpu.memory_space<vmem>>, vector<1x128x128xbf16>
    %33 = vector.shape_cast %32 : vector<1x128x128xbf16> to vector<128x128xbf16>
    %cst_33 = arith.constant dense<0.000000e+00> : vector<142x128xf32>
    %34 = tpu.matmul %31, %33, %cst_33 {dimension_numbers = #tpu.dot_dimension_numbers<[1], [0], [0], [1], [0, 0, 1, 1], [], []>} : vector<142x128xbf16>, vector<128x128xbf16>, vector<142x128xf32> -> vector<142x128xf32>
    %35 = arith.addf %30, %34 : vector<142x128xf32>
    %c1_34 = arith.constant 1 : index
    %c0_35 = arith.constant 0 : index
    %36 = vector.load %arg8[%c1_34, %c0_35] : memref<144x128xbf16, #tpu.memory_space<vmem>>, vector<142x128xbf16>
    %c1_36 = arith.constant 1 : index
    %c0_37 = arith.constant 0 : index
    %c0_38 = arith.constant 0 : index
    %37 = vector.load %arg5[%c1_36, %c0_37, %c0_38] : memref<3x128x128xbf16, #tpu.memory_space<vmem>>, vector<1x128x128xbf16>
    %38 = vector.shape_cast %37 : vector<1x128x128xbf16> to vector<128x128xbf16>
    %cst_39 = arith.constant dense<0.000000e+00> : vector<142x128xf32>
    %39 = tpu.matmul %36, %38, %cst_39 {dimension_numbers = #tpu.dot_dimension_numbers<[1], [0], [0], [1], [0, 0, 1, 1], [], []>} : vector<142x128xbf16>, vector<128x128xbf16>, vector<142x128xf32> -> vector<142x128xf32>
    %40 = arith.addf %35, %39 : vector<142x128xf32>
    %c2_40 = arith.constant 2 : index
    %c0_41 = arith.constant 0 : index
    %41 = vector.load %arg8[%c2_40, %c0_41] : memref<144x128xbf16, #tpu.memory_space<vmem>>, vector<142x128xbf16>
    %c2_42 = arith.constant 2 : index
    %c0_43 = arith.constant 0 : index
    %c0_44 = arith.constant 0 : index
    %42 = vector.load %arg5[%c2_42, %c0_43, %c0_44] : memref<3x128x128xbf16, #tpu.memory_space<vmem>>, vector<1x128x128xbf16>
    %43 = vector.shape_cast %42 : vector<1x128x128xbf16> to vector<128x128xbf16>
    %cst_45 = arith.constant dense<0.000000e+00> : vector<142x128xf32>
    %44 = tpu.matmul %41, %43, %cst_45 {dimension_numbers = #tpu.dot_dimension_numbers<[1], [0], [0], [1], [0, 0, 1, 1], [], []>} : vector<142x128xbf16>, vector<128x128xbf16>, vector<142x128xf32> -> vector<142x128xf32>
    %45 = arith.addf %40, %44 : vector<142x128xf32>
    %c0_46 = arith.constant 0 : index
    %c0_47 = arith.constant 0 : index
    %46 = vector.load %arg6[%c0_46, %c0_47] : memref<1x128xf32, #tpu.memory_space<vmem>>, vector<1x128xf32>
    %47 = vector.broadcast %46 : vector<1x128xf32> to vector<142x128xf32>
    %48 = arith.addf %45, %47 : vector<142x128xf32>
    %cst_48 = arith.constant 0.000000e+00 : f32
    %49 = vector.broadcast %cst_48 : f32 to vector<142x128xf32>
    %50 = arith.maximumf %48, %49 : vector<142x128xf32>
    %c0_49 = arith.constant 0 : index
    %c0_50 = arith.constant 0 : index
    %51 = vector.load %arg7[%c0_49, %c0_50] : memref<144x128xf32, #tpu.memory_space<vmem>>, vector<142x128xf32>
    tpu.vector_store %arg7[%c0_49, %c0_50], %50 {strides = array<i32>} : memref<144x128xf32, #tpu.memory_space<vmem>>, vector<142x128xf32>,
    %cst_51 = arith.constant 0.000000e+00 : f32
    %52 = vector.broadcast %cst_51 : f32 to vector<2x128xf32>
    %c142 = arith.constant 142 : index
    %c0_52 = arith.constant 0 : index
    %53 = vector.load %arg7[%c142, %c0_52] : memref<144x128xf32, #tpu.memory_space<vmem>>, vector<2x128xf32>
    tpu.vector_store %arg7[%c142, %c0_52], %52 {strides = array<i32>} : memref<144x128xf32, #tpu.memory_space<vmem>>, vector<2x128xf32>,
    return
  }
  func.func @transform_0(%arg0: i32) -> (i32, i32) {
    %c0_i32 = arith.constant 0 : i32
    %c0_i32_0 = arith.constant 0 : i32
    return %arg0, %c0_i32 : i32, i32
  }
  func.func @transform_1(%arg0: i32) -> (i32, i32) {
    %c0_i32 = arith.constant 0 : i32
    %c0_i32_0 = arith.constant 0 : i32
    %c0_i32_1 = arith.constant 0 : i32
    return %c0_i32, %c0_i32_0 : i32, i32
  }
  func.func @transform_2(%arg0: i32) -> (i32, i32, i32) {
    %c0_i32 = arith.constant 0 : i32
    %c0_i32_0 = arith.constant 0 : i32
    %c0_i32_1 = arith.constant 0 : i32
    %c0_i32_2 = arith.constant 0 : i32
    return %c0_i32, %c0_i32_0, %c0_i32_1 : i32, i32, i32
  }
  func.func @transform_3(%arg0: i32) -> (i32, i32) {
    %c0_i32 = arith.constant 0 : i32
    %c0_i32_0 = arith.constant 0 : i32
    %c0_i32_1 = arith.constant 0 : i32
    return %c0_i32, %c0_i32_0 : i32, i32
  }
  func.func @transform_4(%arg0: i32) -> (i32, i32, i32) {
    %c0_i32 = arith.constant 0 : i32
    %c0_i32_0 = arith.constant 0 : i32
    %c0_i32_1 = arith.constant 0 : i32
    %c0_i32_2 = arith.constant 0 : i32
    return %c0_i32, %c0_i32_0, %c0_i32_1 : i32, i32, i32
  }
  func.func @transform_5(%arg0: i32) -> (i32, i32) {
    %c0_i32 = arith.constant 0 : i32
    %c0_i32_0 = arith.constant 0 : i32
    %c0_i32_1 = arith.constant 0 : i32
    return %c0_i32, %c0_i32_0 : i32, i32
  }
  func.func @transform_6(%arg0: i32) -> (i32, i32) {
    %c0_i32 = arith.constant 0 : i32
    %c0_i32_0 = arith.constant 0 : i32
    return %arg0, %c0_i32 : i32, i32
  }
}

</mosaic_0001>

<llo_original>
// kernel: tpu_custom_call.1
$region0: #{tpu_custom_call.1}
  #allocation0 [shape = 'u32[]', space=smem, size = 0x4, offset = 0x4, fixed_abs, tag = 'smem constant byte address 0x4 - core index']
  #allocation1 [shape = 'u32[72,128]{1,0:T(1,128)}', space=vmem, size = 0x9000, scoped, tag = 'internal scratch']
  #allocation2 [shape = 'bf16[144,128]{1,0:T(8,128)(2,1)}', space=vmem, size = 0x9000, scoped, tag = 'scratch operand']
  %s0 = inlined_call_operand.vmem [shape: bf16[288,64], index: 0, kind: input, shape index: {}]
  %s1 = inlined_call_operand.vmem [shape: f32[144,1], index: 1, kind: input, shape index: {}]
  %s2 = inlined_call_operand.vmem [shape: bf16[3,64,128], index: 2, kind: input, shape index: {}]
  %s3 = inlined_call_operand.vmem [shape: f32[1,128], index: 3, kind: input, shape index: {}]
  %s4 = inlined_call_operand.vmem [shape: bf16[3,128,128], index: 4, kind: input, shape index: {}]
  %s5 = inlined_call_operand.vmem [shape: f32[1,128], index: 5, kind: input, shape index: {}]
  %s6 = inlined_call_operand.hbm [shape: f32[288,128], index: 6, kind: output, shape index: {}]
  %s7 = sld [smem:[#allocation0]]
  $region57: #{tpu_custom_call.1} parent=0
    _
  %s9 = ssub.s32 1, %s7
  %s10 = scalar_select 0, %s9, %s7
  $region1: #{tpu_custom_call.1} parent=0
    #allocation3 [shape = 'u8[147456]{0}', space=vmem, size = 0x24000, scoped, tag = 'output window, operand 0']
    #allocation4 [shape = 's32[2]{0}', space=sflag, size = 0x8, scoped, tag = 'scoped memory for tpu_custom_call.1']
    %11 = vsyncpa [#allocation4], 0
    %s12 = scalar_lea.sflag [#allocation4], 1
    %13 = vsyncpa %s12, 0
    loop: start=0, step=1, limit=4
    $region2: #{tpu_custom_call.1} parent=1 // loop_pre_header
      _
    $region3: #{tpu_custom_call.1} parent=1 // loop_header
      %s15 = sphi 0, %s19
      %p16 = scmp.ge.s32.totalorder %s15, 4
      %s25 = sphi 0, %s27
      %s28 = sphi 0, %s25
      %s29 = sphi 0, %s28
      %s45 = sphi 0, %s29
      %s49 = sphi 0, %s49
      %s51 = sphi 0, %s49
      %s52 = sphi 0, %s51
      %s66 = sphi 0, %s52
      %s70 = sphi 0, %s70
      %s72 = sphi 0, %s70
      %s73 = sphi 0, %s72
      %s87 = sphi 0, %s73
      %s91 = sphi 0, %s91
      %s93 = sphi 0, %s91
      %s94 = sphi 0, %s93
      %s108 = sphi 0, %s94
      %s112 = sphi 0, %s112
      %s114 = sphi 0, %s112
      %s115 = sphi 0, %s114
      %s129 = sphi 0, %s115
      %s133 = sphi 0, %s133
      %s135 = sphi 0, %s133
      %s136 = sphi 0, %s135
      %s150 = sphi 0, %s136
      %s156 = sphi 0, %s158
      %s159 = sphi 0, %s156
      %s160 = sphi 0, %s159
      %s176 = sphi 0, %s160
    $region4: #{tpu_custom_call.1} parent=1 // loop_header_branch
      %18 = sbr.rel (%p16) target = $region8
    $region5: #{tpu_custom_call.1} parent=1 // loop_body
      %s20 = ssub.s32 %s15, 1
      %s21 = ssub.s32 %s15, 2
      %s22 = sadd.s32 %s15, 1
      %s23 = ssub.s32 %s15, %s22
      %p24 = scmp.eq.s32.totalorder %s23, 0
      %s26 = sadd.s32 %s25, 1
      %s27 = scalar_select %p24, %s25, %s26
      %p30 = pneg %p24
      %p31 = scmp.eq.s32.totalorder %s15, 1
      %p32 = por %p30, %p31
      %p33 = scmp.ne.s32.totalorder %s25, %s28
      %p34 = scmp.eq.s32.totalorder %s15, 0
      %p35 = por %p33, %p34
      %p36 = scmp.ne.s32.totalorder %s25, %s28
      %p37 = scmp.eq.s32.totalorder %s20, 1
      %p38 = por %p36, %p37
      %p39 = scmp.ne.s32.totalorder %s28, %s29
      %p40 = scmp.eq.s32.totalorder %s20, 0
      %p41 = por %p39, %p40
      %p42 = scmp.ne.s32.totalorder %s28, %s29
      %p43 = scmp.eq.s32.totalorder %s21, 1
      %p44 = por %p42, %p43
      %p46 = scmp.ne.s32.totalorder %s29, %s45
      %p47 = scmp.eq.s32.totalorder %s21, 0
      %p48 = por %p46, %p47
      %s50 = sadd.s32 %s49, 1
      %p53 = scmp.eq.s32.totalorder %s15, 1
      %p54 = scmp.ne.s32.totalorder %s49, %s51
      %p55 = scmp.eq.s32.totalorder %s15, 0
      %p56 = por %p54, %p55
      %p57 = scmp.ne.s32.totalorder %s49, %s51
      %p58 = scmp.eq.s32.totalorder %s20, 1
      %p59 = por %p57, %p58
      %p60 = scmp.ne.s32.totalorder %s51, %s52
      %p61 = scmp.eq.s32.totalorder %s20, 0
      %p62 = por %p60, %p61
      %p63 = scmp.ne.s32.totalorder %s51, %s52
      %p64 = scmp.eq.s32.totalorder %s21, 1
      %p65 = por %p63, %p64
      %p67 = scmp.ne.s32.totalorder %s52, %s66
      %p68 = scmp.eq.s32.totalorder %s21, 0
      %p69 = por %p67, %p68
      %s71 = sadd.s32 %s70, 1
      %p74 = scmp.eq.s32.totalorder %s15, 1
      %p75 = scmp.ne.s32.totalorder %s70, %s72
      %p76 = scmp.eq.s32.totalorder %s15, 0
      %p77 = por %p75, %p76
      %p78 = scmp.ne.s32.totalorder %s70, %s72
      %p79 = scmp.eq.s32.totalorder %s20, 1
      %p80 = por %p78, %p79
      %p81 = scmp.ne.s32.totalorder %s72, %s73
      %p82 = scmp.eq.s32.totalorder %s20, 0
      %p83 = por %p81, %p82
      %p84 = scmp.ne.s32.totalorder %s72, %s73
      %p85 = scmp.eq.s32.totalorder %s21, 1
      %p86 = por %p84, %p85
      %p88 = scmp.ne.s32.totalorder %s73, %s87
      %p89 = scmp.eq.s32.totalorder %s21, 0
      %p90 = por %p88, %p89
      %s92 = sadd.s32 %s91, 1
      %p95 = scmp.eq.s32.totalorder %s15, 1
      %p96 = scmp.ne.s32.totalorder %s91, %s93
      %p97 = scmp.eq.s32.totalorder %s15, 0
      %p98 = por %p96, %p97
      %p99 = scmp.ne.s32.totalorder %s91, %s93
      %p100 = scmp.eq.s32.totalorder %s20, 1
      %p101 = por %p99, %p100
      %p102 = scmp.ne.s32.totalorder %s93, %s94
      %p103 = scmp.eq.s32.totalorder %s20, 0
      %p104 = por %p102, %p103
      %p105 = scmp.ne.s32.totalorder %s93, %s94
      %p106 = scmp.eq.s32.totalorder %s21, 1
      %p107 = por %p105, %p106
      %p109 = scmp.ne.s32.totalorder %s94, %s108
      %p110 = scmp.eq.s32.totalorder %s21, 0
      %p111 = por %p109, %p110
      %s113 = sadd.s32 %s112, 1
      %p116 = scmp.eq.s32.totalorder %s15, 1
      %p117 = scmp.ne.s32.totalorder %s112, %s114
      %p118 = scmp.eq.s32.totalorder %s15, 0
      %p119 = por %p117, %p118
      %p120 = scmp.ne.s32.totalorder %s112, %s114
      %p121 = scmp.eq.s32.totalorder %s20, 1
      %p122 = por %p120, %p121
      %p123 = scmp.ne.s32.totalorder %s114, %s115
      %p124 = scmp.eq.s32.totalorder %s20, 0
      %p125 = por %p123, %p124
      %p126 = scmp.ne.s32.totalorder %s114, %s115
      %p127 = scmp.eq.s32.totalorder %s21, 1
      %p128 = por %p126, %p127
      %p130 = scmp.ne.s32.totalorder %s115, %s129
      %p131 = scmp.eq.s32.totalorder %s21, 0
      %p132 = por %p130, %p131
      %s134 = sadd.s32 %s133, 1
      %p137 = scmp.eq.s32.totalorder %s15, 1
      %p138 = scmp.ne.s32.totalorder %s133, %s135
      %p139 = scmp.eq.s32.totalorder %s15, 0
      %p140 = por %p138, %p139
      %p141 = scmp.ne.s32.totalorder %s133, %s135
      %p142 = scmp.eq.s32.totalorder %s20, 1
      %p143 = por %p141, %p142
      %p144 = scmp.ne.s32.totalorder %s135, %s136
      %p145 = scmp.eq.s32.totalorder %s20, 0
      %p146 = por %p144, %p145
      %p147 = scmp.ne.s32.totalorder %s135, %s136
      %p148 = scmp.eq.s32.totalorder %s21, 1
      %p149 = por %p147, %p148
      %p151 = scmp.ne.s32.totalorder %s136, %s150
      %p152 = scmp.eq.s32.totalorder %s21, 0
      %p153 = por %p151, %p152
      %s154 = ssub.s32 %s15, %s22
      %p155 = scmp.eq.s32.totalorder %s154, 0
      %s157 = sadd.s32 %s156, 1
      %s158 = scalar_select %p155, %s156, %s157
      %p161 = pneg %p155
      %p162 = scmp.eq.s32.totalorder %s15, 1
      %p163 = por %p161, %p162
      %p164 = scmp.ne.s32.totalorder %s156, %s159
      %p165 = scmp.eq.s32.totalorder %s15, 0
      %p166 = por %p164, %p165
      %p167 = scmp.ne.s32.totalorder %s156, %s159
      %p168 = scmp.eq.s32.totalorder %s20, 1
      %p169 = por %p167, %p168
      %p170 = scmp.ne.s32.totalorder %s159, %s160
      %p171 = scmp.eq.s32.totalorder %s20, 0
      %p172 = por %p170, %p171
      %p173 = scmp.ne.s32.totalorder %s159, %s160
      %p174 = scmp.eq.s32.totalorder %s21, 1
      %p175 = por %p173, %p174
      %p177 = scmp.ne.s32.totalorder %s160, %s176
      %p178 = scmp.eq.s32.totalorder %s21, 0
      %p179 = por %p177, %p178
      %p180 = scmp.le.s32.totalorder 1, %s15
      %p181 = scmp.lt.s32.totalorder %s15, 3
      %p182 = pnand %p180, %p181
      %p183 = pneg %p182
      // Predicated region
      $region9: #{tpu_custom_call.1} parent=5 // pred_check
        _
      $region10: #{tpu_custom_call.1} parent=5 // pred_check_branch
        %185 = sbr.rel (%p182) target = $region12
      $region11: #{tpu_custom_call.1} parent=5 // pred_region
        %s186 = ssub.s32 %s15, 1
        // Predicated region
        $region13: #{tpu_custom_call.1} parent=11 // pred_check
          %p187 = pneg %p62
        $region14: #{tpu_custom_call.1} parent=11 // pred_check_branch
          %189 = sbr.rel (%p187) target = $region16
        $region15: #{tpu_custom_call.1} parent=11 // pred_region
          _
        $region16: #{tpu_custom_call.1} parent=11 // pred_fallthru
          _
        // Predicated region
        $region17: #{tpu_custom_call.1} parent=11 // pred_check
          %p190 = pneg %p83
        $region18: #{tpu_custom_call.1} parent=11 // pred_check_branch
          %192 = sbr.rel (%p190) target = $region20
        $region19: #{tpu_custom_call.1} parent=11 // pred_region
          _
        $region20: #{tpu_custom_call.1} parent=11 // pred_fallthru
          _
        // Predicated region
        $region21: #{tpu_custom_call.1} parent=11 // pred_check
          %p193 = pneg %p104
        $region22: #{tpu_custom_call.1} parent=11 // pred_check_branch
          %195 = sbr.rel (%p193) target = $region24
        $region23: #{tpu_custom_call.1} parent=11 // pred_region
          _
        $region24: #{tpu_custom_call.1} parent=11 // pred_fallthru
          _
        // Predicated region
        $region25: #{tpu_custom_call.1} parent=11 // pred_check
          %p196 = pneg %p125
        $region26: #{tpu_custom_call.1} parent=11 // pred_check_branch
          %198 = sbr.rel (%p196) target = $region28
        $region27: #{tpu_custom_call.1} parent=11 // pred_region
          _
        $region28: #{tpu_custom_call.1} parent=11 // pred_fallthru
          _
        // Predicated region
        $region29: #{tpu_custom_call.1} parent=11 // pred_check
          %p199 = pneg %p146
        $region30: #{tpu_custom_call.1} parent=11 // pred_check_branch
          %201 = sbr.rel (%p199) target = $region32
        $region31: #{tpu_custom_call.1} parent=11 // pred_region
          _
        $region32: #{tpu_custom_call.1} parent=11 // pred_fallthru
          _
      $region12: #{tpu_custom_call.1} parent=5 // pred_fallthru
        _
      %p202 = scmp.lt.s32.totalorder %s15, 2
      // Predicated region
      $region33: #{tpu_custom_call.1} parent=5 // pred_check
        %p203 = pneg %p202
      $region34: #{tpu_custom_call.1} parent=5 // pred_check_branch
        %205 = sbr.rel (%p203) target = $region36
      $region35: #{tpu_custom_call.1} parent=5 // pred_region
        // Predicated region
        $region37: #{tpu_custom_call.1} parent=35 // pred_check
          %p206 = pneg %p35
        $region38: #{tpu_custom_call.1} parent=35 // pred_check_branch
          %208 = sbr.rel (%p206) target = $region40
        $region39: #{tpu_custom_call.1} parent=35 // pred_region
          %s209 = smul.u32 18, %s15
          %p210 = scmp.lt.s32.totalorder %s209, 35
          %s211 = scalar_select %p210, %s209, 35
          %s212 = smul.addr %s211, 4
          %s213 = scalar_lea.vmem %s0, %s212
          %s214 = smul.u32 18, %s15
        $region40: #{tpu_custom_call.1} parent=35 // pred_fallthru
          _
      $region36: #{tpu_custom_call.1} parent=5 // pred_fallthru
        _
      %p215 = scmp.le.s32.totalorder 1, %s15
      %p216 = scmp.lt.s32.totalorder %s15, 3
      %p217 = pnand %p215, %p216
      %p218 = pneg %p217
      // Predicated region
      $region41: #{tpu_custom_call.1} parent=5 // pred_check
        _
      $region42: #{tpu_custom_call.1} parent=5 // pred_check_branch
        %220 = sbr.rel (%p217) target = $region44
      $region43: #{tpu_custom_call.1} parent=5 // pred_region
        %s221 = ssub.s32 %s15, 1
        %s222 = smul.u32 18, %s20
        %p223 = scmp.lt.s32.totalorder %s222, 35
        %s224 = scalar_select %p223, %s222, 35
        %s225 = smul.addr %s224, 4
        %s226 = scalar_lea.vmem %s0, %s225
        %p227 = pneg %p41
        %p228 = pneg %p38
        %p229 = pneg %p62
        %p230 = pneg %p59
        %p231 = pneg %p83
        %p232 = pneg %p80
        %p233 = pneg %p104
        %p234 = pneg %p101
        %p235 = pneg %p125
        %p236 = pneg %p122
        %p237 = pneg %p146
        %p238 = pneg %p143
        %p239 = pneg %p172
        %p240 = pneg %p169
        %s241 = sand.u32 %s159, 1
        %s242 = scalar_lea.sflag [#allocation4], %s241
        %s243 = sand.u32 %s159, 1
        %s244 = smul.addr %s243, 144
        %s245 = scalar_lea.vmem [#allocation3], %s244
        %s246 = smul.u32 18, %s20
        %p247 = scmp.lt.s32.totalorder %s246, 35
        %s248 = scalar_select %p247, %s246, 35
        %s249 = smul.addr %s248, 4
        %s250 = scalar_lea.vmem %s0, %s249
        %s251 = smul.u32 18, %s20
        %s252 = smul.u32 18, %s20
        %v254 = vld [vmem:[%s250] sm:$0xf]
        %v255 = vld [vmem:[%s250 + $0x4] sm:$0xf]
        %v256 = vld [vmem:[%s250 + $0x8] sm:$0xf]
        %v257 = vld [vmem:[%s250 + $0xc] sm:$0xf]
        %v258 = vld [vmem:[%s250 + $0x10] sm:$0xf]
        %v259 = vld [vmem:[%s250 + $0x14] sm:$0xf]
        %v260 = vld [vmem:[%s250 + $0x18] sm:$0xf]
        %v261 = vld [vmem:[%s250 + $0x1c] sm:$0xf]
        %v262 = vld [vmem:[%s250 + $0x20] sm:$0xf]
        %v263 = vld [vmem:[%s250 + $0x24] sm:$0xf]
        %v264 = vld [vmem:[%s250 + $0x28] sm:$0xf]
        %v265 = vld [vmem:[%s250 + $0x2c] sm:$0xf]
        %v266 = vld [vmem:[%s250 + $0x30] sm:$0xf]
        %v267 = vld [vmem:[%s250 + $0x34] sm:$0xf]
        %v268 = vld [vmem:[%s250 + $0x38] sm:$0xf]
        %v269 = vld [vmem:[%s250 + $0x3c] sm:$0xf]
        %v270 = vld [vmem:[%s250 + $0x40] sm:$0xf]
        %v271 = vld [vmem:[%s250 + $0x44] sm:$0x7]
        %v272 = vld [vmem:[%s2] sm:$0xf]
        %v273 = vld [vmem:[%s2 + $0x4] sm:$0xf]
        %v274 = vld [vmem:[%s2 + $0x8] sm:$0xf]
        %v275 = vld [vmem:[%s2 + $0xc] sm:$0xf]
        %v276 = vld [vmem:[%s2 + $0x10] sm:$0xf]
        %v277 = vld [vmem:[%s2 + $0x14] sm:$0xf]
        %v278 = vld [vmem:[%s2 + $0x18] sm:$0xf]
        %v279 = vld [vmem:[%s2 + $0x1c] sm:$0xf]
        %v280 = vld [vmem:[%s250 + $0x44] sm:$0xf]
        %s281 = scalar_lea.vmem %s2, 32
        %v282 = vld [vmem:[%s281] sm:$0xf]
        %v283 = vld [vmem:[%s281 + $0x4] sm:$0xf]
        %v284 = vld [vmem:[%s281 + $0x8] sm:$0xf]
        %v285 = vld [vmem:[%s281 + $0xc] sm:$0xf]
        %v286 = vld [vmem:[%s281 + $0x10] sm:$0xf]
        %v287 = vld [vmem:[%s281 + $0x14] sm:$0xf]
        %v288 = vld [vmem:[%s281 + $0x18] sm:$0xf]
        %v289 = vld [vmem:[%s281 + $0x1c] sm:$0xf]
        %v308 = vunpack.c.l.b16 %v254
        %v309 = vunpack.c.l.b16 %v255
        %v310 = vunpack.c.l.b16 %v256
        %v311 = vunpack.c.l.b16 %v257
        %v312 = vunpack.c.l.b16 %v258
        %v313 = vunpack.c.l.b16 %v259
        %v314 = vunpack.c.l.b16 %v260
        %v315 = vunpack.c.l.b16 %v261
        %v316 = vunpack.c.l.b16 %v262
        %v317 = vunpack.c.l.b16 %v263
        %v318 = vunpack.c.l.b16 %v264
        %v319 = vunpack.c.l.b16 %v265
        %v320 = vunpack.c.l.b16 %v266
        %v321 = vunpack.c.l.b16 %v267
        %v322 = vunpack.c.l.b16 %v268
        %v323 = vunpack.c.l.b16 %v269
        %v324 = vunpack.c.l.b16 %v270
        %v325 = vunpack.c.l.b16 %v280
        %v326 = vpack.c.b16 %v309, %v308
        %v327 = vpack.c.b16 %v311, %v310
        %v328 = vpack.c.b16 %v313, %v312
        %v329 = vpack.c.b16 %v315, %v314
        %v330 = vpack.c.b16 %v317, %v316
        %v331 = vpack.c.b16 %v319, %v318
        %v332 = vpack.c.b16 %v321, %v320
        %v333 = vpack.c.b16 %v323, %v322
        %v334 = vpack.c.b16 %v325, %v324
        %vm335 = vsmask.f32 7424
        %v337 = vshrl.u32 %v326, 16
        %v339 = vshll.u32 %v326, 16
        %v341 = vrot.slane %v339, 1
        %v342 = vor.u32 %v337, %v341
        %v344 = vshll.u32 %v327, 16
        %v346 = vrot.slane %v344, 1
        %v347 = vsel %vm335, %v342, %v346
        %v348 = vshrl.u32 %v327, 16
        %v350 = vor.u32 %v348, %v346
        %v352 = vshll.u32 %v328, 16
        %v354 = vrot.slane %v352, 1
        %v355 = vsel %vm335, %v350, %v354
        %v356 = vshrl.u32 %v328, 16
        %v358 = vor.u32 %v356, %v354
        %v360 = vshll.u32 %v329, 16
        %v362 = vrot.slane %v360, 1
        %v363 = vsel %vm335, %v358, %v362
        %v364 = vshrl.u32 %v329, 16
        %v366 = vor.u32 %v364, %v362
        %v368 = vshll.u32 %v330, 16
        %v370 = vrot.slane %v368, 1
        %v371 = vsel %vm335, %v366, %v370
        %v372 = vshrl.u32 %v330, 16
        %v374 = vor.u32 %v372, %v370
        %v376 = vshll.u32 %v331, 16
        %v378 = vrot.slane %v376, 1
        %v379 = vsel %vm335, %v374, %v378
        %v380 = vshrl.u32 %v331, 16
        %v382 = vor.u32 %v380, %v378
        %v384 = vshll.u32 %v332, 16
        %v386 = vrot.slane %v384, 1
        %v387 = vsel %vm335, %v382, %v386
        %v388 = vshrl.u32 %v332, 16
        %v390 = vor.u32 %v388, %v386
        %v392 = vshll.u32 %v333, 16
        %v394 = vrot.slane %v392, 1
        %v395 = vsel %vm335, %v390, %v394
        %v396 = vshrl.u32 %v333, 16
        %v398 = vor.u32 %v396, %v394
        %v400 = vshll.u32 %v334, 16
        %v402 = vrot.slane %v400, 1
        %v403 = vsel %vm335, %v398, %v402
        %v404 = vshrl.u32 %v334, 16
        %v406 = vor.u32 %v404, %v402
        %v415 = vunpack.c.l.b16 %v282
        %v416 = vunpack.c.l.b16 %v283
        %v417 = vunpack.c.l.b16 %v284
        %v418 = vunpack.c.l.b16 %v285
        %v419 = vunpack.c.l.b16 %v286
        %v420 = vunpack.c.l.b16 %v287
        %v421 = vunpack.c.l.b16 %v288
        %v422 = vunpack.c.l.b16 %v289
        %v423 = vpack.c.b16 %v416, %v415
        %v424 = vpack.c.b16 %v418, %v417
        %v425 = vpack.c.b16 %v420, %v419
        %v426 = vpack.c.b16 %v422, %v421
        %vm431 = vcmask 523264
        %v433 = vsel %vm431, %v347, 0
        %v436 = vsel %vm431, %v355, 0
        %v439 = vsel %vm431, %v363, 0
        %v442 = vsel %vm431, %v371, 0
        %v445 = vsel %vm431, %v379, 0
        %v448 = vsel %vm431, %v387, 0
        %v451 = vsel %vm431, %v395, 0
        %v454 = vsel %vm431, %v403, 0
        %v457 = vsel %vm431, %v406, 0
        %459 = vmatpush.bf16.msra.mxu0 0
        %460 = vmatpush.bf16.msra.mxu0 0
        %461 = vmatpush.bf16.msra.mxu0 0
        %462 = vmatpush.bf16.msra.mxu0 0
        %463 = vmatpush.bf16.msra.mxu0 %v426
        %464 = vmatpush.bf16.msra.mxu0 %v425
        %465 = vmatpush.bf16.msra.mxu0 %v424
        %466 = vmatpush.bf16.msra.mxu0 %v423
        %467 = vmatmul.bf16.gmra.mxu0 %v433
        %v468 = vpop.f32.mrf.mxu0
        %v469 = vadd.f32 0.0, %v468
        %v470 = vpop.f32.mrf.mxu0
        %v471 = vadd.f32 0.0, %v470
        %472 = vmatmul.bf16.gmra.mxu0 %v436
        %v473 = vpop.f32.mrf.mxu0
        %v474 = vadd.f32 0.0, %v473
        %v475 = vpop.f32.mrf.mxu0
        %v476 = vadd.f32 0.0, %v475
        %477 = vmatmul.bf16.gmra.mxu0 %v439
        %v478 = vpop.f32.mrf.mxu0
        %v479 = vadd.f32 0.0, %v478
        %v480 = vpop.f32.mrf.mxu0
        %v481 = vadd.f32 0.0, %v480
        %482 = vmatmul.bf16.gmra.mxu0 %v442
        %v483 = vpop.f32.mrf.mxu0
        %v484 = vadd.f32 0.0, %v483
        %v485 = vpop.f32.mrf.mxu0
        %v486 = vadd.f32 0.0, %v485
        %487 = vmatmul.bf16.gmra.mxu0 %v445
        %v488 = vpop.f32.mrf.mxu0
        %v489 = vadd.f32 0.0, %v488
        %v490 = vpop.f32.mrf.mxu0
        %v491 = vadd.f32 0.0, %v490
        %492 = vmatmul.bf16.gmra.mxu0 %v448
        %v493 = vpop.f32.mrf.mxu0
        %v494 = vadd.f32 0.0, %v493
        %v495 = vpop.f32.mrf.mxu0
        %v496 = vadd.f32 0.0, %v495
        %497 = vmatmul.bf16.gmra.mxu0 %v451
        %v498 = vpop.f32.mrf.mxu0
        %v499 = vadd.f32 0.0, %v498
        %v500 = vpop.f32.mrf.mxu0
        %v501 = vadd.f32 0.0, %v500
        %502 = vmatmul.bf16.gmra.mxu0 %v454
        %v503 = vpop.f32.mrf.mxu0
        %v504 = vadd.f32 0.0, %v503
        %v505 = vpop.f32.mrf.mxu0
        %v506 = vadd.f32 0.0, %v505
        %507 = vmatmul.bf16.gmra.mxu0 %v457
        %v508 = vpop.f32.mrf.mxu0
        %v509 = vadd.f32 0.0, %v508
        %v510 = vpop.f32.mrf.mxu0
        %v511 = vadd.f32 0.0, %v510
        %512 = vdwg.mxu0
        %v514 = vunpack.c.l.b16 %v271
        %v515 = vpack.c.b16 %v514, %v324
        %v524 = vunpack.c.l.b16 %v272
        %v525 = vunpack.c.l.b16 %v273
        %v526 = vunpack.c.l.b16 %v274
        %v527 = vunpack.c.l.b16 %v275
        %v528 = vunpack.c.l.b16 %v276
        %v529 = vunpack.c.l.b16 %v277
        %v530 = vunpack.c.l.b16 %v278
        %v531 = vunpack.c.l.b16 %v279
        %v532 = vpack.c.b16 %v525, %v524
        %v533 = vpack.c.b16 %v527, %v526
        %v534 = vpack.c.b16 %v529, %v528
        %v535 = vpack.c.b16 %v531, %v530
        %v540 = vsel %vm431, %v326, 0
        %v542 = vsel %vm431, %v327, 0
        %v544 = vsel %vm431, %v328, 0
        %v546 = vsel %vm431, %v329, 0
        %v548 = vsel %vm431, %v330, 0
        %v550 = vsel %vm431, %v331, 0
        %v552 = vsel %vm431, %v332, 0
        %v554 = vsel %vm431, %v333, 0
        %v557 = vsel %vm431, %v515, 0
        %559 = vmatpush.bf16.msra.mxu0 0
        %560 = vmatpush.bf16.msra.mxu0 0
        %561 = vmatpush.bf16.msra.mxu0 0
        %562 = vmatpush.bf16.msra.mxu0 0
        %563 = vmatpush.bf16.msra.mxu0 %v535
        %564 = vmatpush.bf16.msra.mxu0 %v534
        %565 = vmatpush.bf16.msra.mxu0 %v533
        %566 = vmatpush.bf16.msra.mxu0 %v532
        %567 = vmatmul.bf16.gmra.mxu0 %v540
        %v568 = vpop.f32.mrf.mxu0
        %v569 = vadd.f32 %v469, %v568
        %v570 = vpop.f32.mrf.mxu0
        %v571 = vadd.f32 %v471, %v570
        %572 = vmatmul.bf16.gmra.mxu0 %v542
        %v573 = vpop.f32.mrf.mxu0
        %v574 = vadd.f32 %v474, %v573
        %v575 = vpop.f32.mrf.mxu0
        %v576 = vadd.f32 %v476, %v575
        %577 = vmatmul.bf16.gmra.mxu0 %v544
        %v578 = vpop.f32.mrf.mxu0
        %v579 = vadd.f32 %v479, %v578
        %v580 = vpop.f32.mrf.mxu0
        %v581 = vadd.f32 %v481, %v580
        %582 = vmatmul.bf16.gmra.mxu0 %v546
        %v583 = vpop.f32.mrf.mxu0
        %v584 = vadd.f32 %v484, %v583
        %v585 = vpop.f32.mrf.mxu0
        %v586 = vadd.f32 %v486, %v585
        %587 = vmatmul.bf16.gmra.mxu0 %v548
        %v588 = vpop.f32.mrf.mxu0
        %v589 = vadd.f32 %v489, %v588
        %v590 = vpop.f32.mrf.mxu0
        %v591 = vadd.f32 %v491, %v590
        %592 = vmatmul.bf16.gmra.mxu0 %v550
        %v593 = vpop.f32.mrf.mxu0
        %v594 = vadd.f32 %v494, %v593
        %v595 = vpop.f32.mrf.mxu0
        %v596 = vadd.f32 %v496, %v595
        %597 = vmatmul.bf16.gmra.mxu0 %v552
        %v598 = vpop.f32.mrf.mxu0
        %v599 = vadd.f32 %v499, %v598
        %v600 = vpop.f32.mrf.mxu0
        %v601 = vadd.f32 %v501, %v600
        %602 = vmatmul.bf16.gmra.mxu0 %v554
        %v603 = vpop.f32.mrf.mxu0
        %v604 = vadd.f32 %v504, %v603
        %v605 = vpop.f32.mrf.mxu0
        %v606 = vadd.f32 %v506, %v605
        %607 = vmatmul.bf16.gmra.mxu0 %v557
        %v608 = vpop.f32.mrf.mxu0
        %v609 = vadd.f32 %v509, %v608
        %v610 = vpop.f32.mrf.mxu0
        %v611 = vadd.f32 %v511, %v610
        %612 = vdwg.mxu0
        %v613 = vld [vmem:[%s250] sm:$0xe]
        %s614 = scalar_lea.vmem %s2, 64
        %v615 = vld [vmem:[%s614] sm:$0xf]
        %v616 = vld [vmem:[%s614 + $0x4] sm:$0xf]
        %v617 = vld [vmem:[%s614 + $0x8] sm:$0xf]
        %v618 = vld [vmem:[%s614 + $0xc] sm:$0xf]
        %v619 = vld [vmem:[%s614 + $0x10] sm:$0xf]
        %v620 = vld [vmem:[%s614 + $0x14] sm:$0xf]
        %v621 = vld [vmem:[%s614 + $0x18] sm:$0xf]
        %v622 = vld [vmem:[%s614 + $0x1c] sm:$0xf]
        %v624 = vunpack.c.l.b16 %v613
        %v625 = vpack.c.b16 %v309, %v624
        %vm626 = vcmask 1046528
        %v627 = vrot.slane %v625, 1
        %v628 = vrot.slane %v327, 1
        %v629 = vsel %vm626, %v627, %v628
        %v630 = vrot.slane %v328, 1
        %v631 = vsel %vm626, %v628, %v630
        %v632 = vrot.slane %v329, 1
        %v633 = vsel %vm626, %v630, %v632
        %v634 = vrot.slane %v330, 1
        %v635 = vsel %vm626, %v632, %v634
        %v636 = vrot.slane %v331, 1
        %v637 = vsel %vm626, %v634, %v636
        %v638 = vrot.slane %v332, 1
        %v639 = vsel %vm626, %v636, %v638
        %v640 = vrot.slane %v333, 1
        %v641 = vsel %vm626, %v638, %v640
        %v642 = vrot.slane %v334, 1
        %v643 = vsel %vm626, %v640, %v642
        %v652 = vunpack.c.l.b16 %v615
        %v653 = vunpack.c.l.b16 %v616
        %v654 = vunpack.c.l.b16 %v617
        %v655 = vunpack.c.l.b16 %v618
        %v656 = vunpack.c.l.b16 %v619
        %v657 = vunpack.c.l.b16 %v620
        %v658 = vunpack.c.l.b16 %v621
        %v659 = vunpack.c.l.b16 %v622
        %v660 = vpack.c.b16 %v653, %v652
        %v661 = vpack.c.b16 %v655, %v654
        %v662 = vpack.c.b16 %v657, %v656
        %v663 = vpack.c.b16 %v659, %v658
        %v669 = vsel %vm431, %v629, 0
        %v672 = vsel %vm431, %v631, 0
        %v675 = vsel %vm431, %v633, 0
        %v678 = vsel %vm431, %v635, 0
        %v681 = vsel %vm431, %v637, 0
        %v684 = vsel %vm431, %v639, 0
        %v687 = vsel %vm431, %v641, 0
        %v690 = vsel %vm431, %v643, 0
        %v693 = vsel %vm431, %v642, 0
        %695 = vmatpush.bf16.msra.mxu0 0
        %696 = vmatpush.bf16.msra.mxu0 0
        %697 = vmatpush.bf16.msra.mxu0 0
        %698 = vmatpush.bf16.msra.mxu0 0
        %699 = vmatpush.bf16.msra.mxu0 %v663
        %700 = vmatpush.bf16.msra.mxu0 %v662
        %701 = vmatpush.bf16.msra.mxu0 %v661
        %702 = vmatpush.bf16.msra.mxu0 %v660
        %703 = vmatmul.bf16.gmra.mxu0 %v669
        %v704 = vpop.f32.mrf.mxu0
        %v705 = vadd.f32 0.0, %v704
        %v706 = vpop.f32.mrf.mxu0
        %v707 = vadd.f32 0.0, %v706
        %708 = vmatmul.bf16.gmra.mxu0 %v672
        %v709 = vpop.f32.mrf.mxu0
        %v710 = vadd.f32 0.0, %v709
        %v711 = vpop.f32.mrf.mxu0
        %v712 = vadd.f32 0.0, %v711
        %713 = vmatmul.bf16.gmra.mxu0 %v675
        %v714 = vpop.f32.mrf.mxu0
        %v715 = vadd.f32 0.0, %v714
        %v716 = vpop.f32.mrf.mxu0
        %v717 = vadd.f32 0.0, %v716
        %718 = vmatmul.bf16.gmra.mxu0 %v678
        %v719 = vpop.f32.mrf.mxu0
        %v720 = vadd.f32 0.0, %v719
        %v721 = vpop.f32.mrf.mxu0
        %v722 = vadd.f32 0.0, %v721
        %723 = vmatmul.bf16.gmra.mxu0 %v681
        %v724 = vpop.f32.mrf.mxu0
        %v725 = vadd.f32 0.0, %v724
        %v726 = vpop.f32.mrf.mxu0
        %v727 = vadd.f32 0.0, %v726
        %728 = vmatmul.bf16.gmra.mxu0 %v684
        %v729 = vpop.f32.mrf.mxu0
        %v730 = vadd.f32 0.0, %v729
        %v731 = vpop.f32.mrf.mxu0
        %v732 = vadd.f32 0.0, %v731
        %733 = vmatmul.bf16.gmra.mxu0 %v687
        %v734 = vpop.f32.mrf.mxu0
        %v735 = vadd.f32 0.0, %v734
        %v736 = vpop.f32.mrf.mxu0
        %v737 = vadd.f32 0.0, %v736
        %738 = vmatmul.bf16.gmra.mxu0 %v690
        %v739 = vpop.f32.mrf.mxu0
        %v740 = vadd.f32 0.0, %v739
        %v741 = vpop.f32.mrf.mxu0
        %v742 = vadd.f32 0.0, %v741
        %743 = vmatmul.bf16.gmra.mxu0 %v693
        %v744 = vpop.f32.mrf.mxu0
        %v745 = vadd.f32 0.0, %v744
        %v746 = vpop.f32.mrf.mxu0
        %v747 = vadd.f32 0.0, %v746
        %748 = vdwg.mxu0
        %v749 = vadd.f32 %v569, %v705
        %v750 = vadd.f32 %v571, %v707
        %v751 = vadd.f32 %v574, %v710
        %v752 = vadd.f32 %v576, %v712
        %v753 = vadd.f32 %v579, %v715
        %v754 = vadd.f32 %v581, %v717
        %v755 = vadd.f32 %v584, %v720
        %v756 = vadd.f32 %v586, %v722
        %v757 = vadd.f32 %v589, %v725
        %v758 = vadd.f32 %v591, %v727
        %v759 = vadd.f32 %v594, %v730
        %v760 = vadd.f32 %v596, %v732
        %v761 = vadd.f32 %v599, %v735
        %v762 = vadd.f32 %v601, %v737
        %v763 = vadd.f32 %v604, %v740
        %v764 = vadd.f32 %v606, %v742
        %v765 = vadd.f32 %v609, %v745
        %v766 = vadd.f32 %v611, %v747
        %v767 = vld [vmem:[%s3] sm:$0x1]
        %v769 = vperm.slane %v767, 0
        %v771 = vadd.f32 %v749, %v769
        %v772 = vadd.f32 %v750, %v769
        %v773 = vadd.f32 %v751, %v769
        %v774 = vadd.f32 %v752, %v769
        %v775 = vadd.f32 %v753, %v769
        %v776 = vadd.f32 %v754, %v769
        %v777 = vadd.f32 %v755, %v769
        %v778 = vadd.f32 %v756, %v769
        %v779 = vadd.f32 %v757, %v769
        %v780 = vadd.f32 %v758, %v769
        %v781 = vadd.f32 %v759, %v769
        %v782 = vadd.f32 %v760, %v769
        %v783 = vadd.f32 %v761, %v769
        %v784 = vadd.f32 %v762, %v769
        %v785 = vadd.f32 %v763, %v769
        %v786 = vadd.f32 %v764, %v769
        %v787 = vadd.f32 %v765, %v769
        %v788 = vadd.f32 %v766, %v769
        %v789 = vmax.f32 %v771, 0.0
        %v790 = vmax.f32 %v772, 0.0
        %v791 = vmax.f32 %v773, 0.0
        %v792 = vmax.f32 %v774, 0.0
        %v793 = vmax.f32 %v775, 0.0
        %v794 = vmax.f32 %v776, 0.0
        %v795 = vmax.f32 %v777, 0.0
        %v796 = vmax.f32 %v778, 0.0
        %v797 = vmax.f32 %v779, 0.0
        %v798 = vmax.f32 %v780, 0.0
        %v799 = vmax.f32 %v781, 0.0
        %v800 = vmax.f32 %v782, 0.0
        %v801 = vmax.f32 %v783, 0.0
        %v802 = vmax.f32 %v784, 0.0
        %v803 = vmax.f32 %v785, 0.0
        %v804 = vmax.f32 %v786, 0.0
        %v805 = vmax.f32 %v787, 0.0
        %v806 = vmax.f32 %v788, 0.0
        %v807 = vld [vmem:[%s1 + $0x1] sm:$0xff]
        %v808 = vld [vmem:[%s1 + $0x9] sm:$0xff]
        %v809 = vld [vmem:[%s1 + $0x11] sm:$0xff]
        %v810 = vld [vmem:[%s1 + $0x19] sm:$0xff]
        %v811 = vld [vmem:[%s1 + $0x21] sm:$0xff]
        %v812 = vld [vmem:[%s1 + $0x29] sm:$0xff]
        %v813 = vld [vmem:[%s1 + $0x31] sm:$0xff]
        %v814 = vld [vmem:[%s1 + $0x39] sm:$0xff]
        %v815 = vld [vmem:[%s1 + $0x41] sm:$0xff]
        %v816 = vld [vmem:[%s1 + $0x49] sm:$0xff]
        %v817 = vld [vmem:[%s1 + $0x51] sm:$0xff]
        %v818 = vld [vmem:[%s1 + $0x59] sm:$0xff]
        %v819 = vld [vmem:[%s1 + $0x61] sm:$0xff]
        %v820 = vld [vmem:[%s1 + $0x69] sm:$0xff]
        %v821 = vld [vmem:[%s1 + $0x71] sm:$0xff]
        %v822 = vld [vmem:[%s1 + $0x79] sm:$0xff]
        %v823 = vld [vmem:[%s1 + $0x81] sm:$0xff]
        %v824 = vld [vmem:[%s1 + $0x89] sm:$0x3f]
        %826 = vset.pattern.permute.xlu0 0
        %827 = vperm.xlu0 %826, %v807
        %v828 = vpop.permute.xlu0 %827
        %831 = vset.pattern.permute.xlu0 0
        %832 = vperm.xlu0 %831, %v808
        %v833 = vpop.permute.xlu0 %832
        %836 = vset.pattern.permute.xlu0 0
        %837 = vperm.xlu0 %836, %v809
        %v838 = vpop.permute.xlu0 %837
        %841 = vset.pattern.permute.xlu0 0
        %842 = vperm.xlu0 %841, %v810
        %v843 = vpop.permute.xlu0 %842
        %846 = vset.pattern.permute.xlu0 0
        %847 = vperm.xlu0 %846, %v811
        %v848 = vpop.permute.xlu0 %847
        %851 = vset.pattern.permute.xlu0 0
        %852 = vperm.xlu0 %851, %v812
        %v853 = vpop.permute.xlu0 %852
        %856 = vset.pattern.permute.xlu0 0
        %857 = vperm.xlu0 %856, %v813
        %v858 = vpop.permute.xlu0 %857
        %861 = vset.pattern.permute.xlu0 0
        %862 = vperm.xlu0 %861, %v814
        %v863 = vpop.permute.xlu0 %862
        %866 = vset.pattern.permute.xlu0 0
        %867 = vperm.xlu0 %866, %v815
        %v868 = vpop.permute.xlu0 %867
        %871 = vset.pattern.permute.xlu0 0
        %872 = vperm.xlu0 %871, %v816
        %v873 = vpop.permute.xlu0 %872
        %876 = vset.pattern.permute.xlu0 0
        %877 = vperm.xlu0 %876, %v817
        %v878 = vpop.permute.xlu0 %877
        %881 = vset.pattern.permute.xlu0 0
        %882 = vperm.xlu0 %881, %v818
        %v883 = vpop.permute.xlu0 %882
        %886 = vset.pattern.permute.xlu0 0
        %887 = vperm.xlu0 %886, %v819
        %v888 = vpop.permute.xlu0 %887
        %891 = vset.pattern.permute.xlu0 0
        %892 = vperm.xlu0 %891, %v820
        %v893 = vpop.permute.xlu0 %892
        %896 = vset.pattern.permute.xlu0 0
        %897 = vperm.xlu0 %896, %v821
        %v898 = vpop.permute.xlu0 %897
        %901 = vset.pattern.permute.xlu0 0
        %902 = vperm.xlu0 %901, %v822
        %v903 = vpop.permute.xlu0 %902
        %906 = vset.pattern.permute.xlu0 0
        %907 = vperm.xlu0 %906, %v823
        %v908 = vpop.permute.xlu0 %907
        %911 = vset.pattern.permute.xlu0 0
        %912 = vperm.xlu0 %911, %v824
        %v913 = vpop.permute.xlu0 %912
        %v915 = vmul.f32 %v789, %v828
        %v916 = vmul.f32 %v790, %v833
        %v917 = vmul.f32 %v791, %v838
        %v918 = vmul.f32 %v792, %v843
        %v919 = vmul.f32 %v793, %v848
        %v920 = vmul.f32 %v794, %v853
        %v921 = vmul.f32 %v795, %v858
        %v922 = vmul.f32 %v796, %v863
        %v923 = vmul.f32 %v797, %v868
        %v924 = vmul.f32 %v798, %v873
        %v925 = vmul.f32 %v799, %v878
        %v926 = vmul.f32 %v800, %v883
        %v927 = vmul.f32 %v801, %v888
        %v928 = vmul.f32 %v802, %v893
        %v929 = vmul.f32 %v803, %v898
        %v930 = vmul.f32 %v804, %v903
        %v931 = vmul.f32 %v805, %v908
        %v932 = vmul.f32 %v806, %v913
        %v933 = vpack.c.bf16 %v915, %v915
        %v934 = vpack.c.bf16 %v916, %v916
        %v935 = vpack.c.bf16 %v917, %v917
        %v936 = vpack.c.bf16 %v918, %v918
        %v937 = vpack.c.bf16 %v919, %v919
        %v938 = vpack.c.bf16 %v920, %v920
        %v939 = vpack.c.bf16 %v921, %v921
        %v940 = vpack.c.bf16 %v922, %v922
        %v941 = vpack.c.bf16 %v923, %v923
        %v942 = vpack.c.bf16 %v924, %v924
        %v943 = vpack.c.bf16 %v925, %v925
        %v944 = vpack.c.bf16 %v926, %v926
        %v945 = vpack.c.bf16 %v927, %v927
        %v946 = vpack.c.bf16 %v928, %v928
        %v947 = vpack.c.bf16 %v929, %v929
        %v948 = vpack.c.bf16 %v930, %v930
        %v949 = vpack.c.bf16 %v931, %v931
        %v950 = vpack.c.bf16 %v932, %v932
        %vm951 = vcmask 1040384
        %vm952 = vsmask.f32 256
        %vm953 = vmand %vm951, %vm952
        %v954 = vld [vmem:[#allocation2] sm:$0x1]
        %v955 = vsel %vm953, 0, %v954
        %956 = vst [vmem:[#allocation2] sm:$0x1] %v955
        %vm957 = vcmask 1043459
        %vm958 = vsmask.f32 7950
        %vm959 = vmand %vm957, %vm958
        %v960 = vld [vmem:[#allocation2 + $0x44] sm:$0x8]
        %v961 = vsel %vm959, 0, %v960
        %962 = vst [vmem:[#allocation2 + $0x44] sm:$0x8] %v961
        %vm963 = vsmask.f32 4368
        %vm964 = vmor %vm952, %vm963
        %v966 = vshrl.u32 %v933, 16
        %v968 = vrot.slane %v966, 7
        %v969 = vshll.u32 %v933, 16
        %v971 = vor.u32 %v968, %v969
        %v972 = vrot.slane %v968, 4
        %v974 = vshrl.u32 %v934, 16
        %v976 = vrot.slane %v974, 7
        %v977 = vshll.u32 %v934, 16
        %v979 = vor.u32 %v976, %v977
        %v980 = vsel %vm964, %v972, %v979
        %v981 = vrot.slane %v976, 4
        %v983 = vshrl.u32 %v935, 16
        %v985 = vrot.slane %v983, 7
        %v986 = vshll.u32 %v935, 16
        %v988 = vor.u32 %v985, %v986
        %v989 = vsel %vm964, %v981, %v988
        %v990 = vrot.slane %v985, 4
        %v992 = vshrl.u32 %v936, 16
        %v994 = vrot.slane %v992, 7
        %v995 = vshll.u32 %v936, 16
        %v997 = vor.u32 %v994, %v995
        %v998 = vsel %vm964, %v990, %v997
        %v999 = vrot.slane %v994, 4
        %v1001 = vshrl.u32 %v937, 16
        %v1003 = vrot.slane %v1001, 7
        %v1004 = vshll.u32 %v937, 16
        %v1006 = vor.u32 %v1003, %v1004
        %v1007 = vsel %vm964, %v999, %v1006
        %v1008 = vrot.slane %v1003, 4
        %v1010 = vshrl.u32 %v938, 16
        %v1012 = vrot.slane %v1010, 7
        %v1013 = vshll.u32 %v938, 16
        %v1015 = vor.u32 %v1012, %v1013
        %v1016 = vsel %vm964, %v1008, %v1015
        %v1017 = vrot.slane %v1012, 4
        %v1019 = vshrl.u32 %v939, 16
        %v1021 = vrot.slane %v1019, 7
        %v1022 = vshll.u32 %v939, 16
        %v1024 = vor.u32 %v1021, %v1022
        %v1025 = vsel %vm964, %v1017, %v1024
        %v1026 = vrot.slane %v1021, 4
        %v1028 = vshrl.u32 %v940, 16
        %v1030 = vrot.slane %v1028, 7
        %v1031 = vshll.u32 %v940, 16
        %v1033 = vor.u32 %v1030, %v1031
        %v1034 = vsel %vm964, %v1026, %v1033
        %v1035 = vrot.slane %v1030, 4
        %v1037 = vshrl.u32 %v941, 16
        %v1039 = vrot.slane %v1037, 7
        %v1040 = vshll.u32 %v941, 16
        %v1042 = vor.u32 %v1039, %v1040
        %v1043 = vsel %vm964, %v1035, %v1042
        %v1044 = vrot.slane %v1039, 4
        %v1046 = vshrl.u32 %v942, 16
        %v1048 = vrot.slane %v1046, 7
        %v1049 = vshll.u32 %v942, 16
        %v1051 = vor.u32 %v1048, %v1049
        %v1052 = vsel %vm964, %v1044, %v1051
        %v1053 = vrot.slane %v1048, 4
        %v1055 = vshrl.u32 %v943, 16
        %v1057 = vrot.slane %v1055, 7
        %v1058 = vshll.u32 %v943, 16
        %v1060 = vor.u32 %v1057, %v1058
        %v1061 = vsel %vm964, %v1053, %v1060
        %v1062 = vrot.slane %v1057, 4
        %v1064 = vshrl.u32 %v944, 16
        %v1066 = vrot.slane %v1064, 7
        %v1067 = vshll.u32 %v944, 16
        %v1069 = vor.u32 %v1066, %v1067
        %v1070 = vsel %vm964, %v1062, %v1069
        %v1071 = vrot.slane %v1066, 4
        %v1073 = vshrl.u32 %v945, 16
        %v1075 = vrot.slane %v1073, 7
        %v1076 = vshll.u32 %v945, 16
        %v1078 = vor.u32 %v1075, %v1076
        %v1079 = vsel %vm964, %v1071, %v1078
        %v1080 = vrot.slane %v1075, 4
        %v1082 = vshrl.u32 %v946, 16
        %v1084 = vrot.slane %v1082, 7
        %v1085 = vshll.u32 %v946, 16
        %v1087 = vor.u32 %v1084, %v1085
        %v1088 = vsel %vm964, %v1080, %v1087
        %v1089 = vrot.slane %v1084, 4
        %v1091 = vshrl.u32 %v947, 16
        %v1093 = vrot.slane %v1091, 7
        %v1094 = vshll.u32 %v947, 16
        %v1096 = vor.u32 %v1093, %v1094
        %v1097 = vsel %vm964, %v1089, %v1096
        %v1098 = vrot.slane %v1093, 4
        %v1100 = vshrl.u32 %v948, 16
        %v1102 = vrot.slane %v1100, 7
        %v1103 = vshll.u32 %v948, 16
        %v1105 = vor.u32 %v1102, %v1103
        %v1106 = vsel %vm964, %v1098, %v1105
        %v1107 = vrot.slane %v1102, 4
        %v1109 = vshrl.u32 %v949, 16
        %v1111 = vrot.slane %v1109, 7
        %v1112 = vshll.u32 %v949, 16
        %v1114 = vor.u32 %v1111, %v1112
        %v1115 = vsel %vm964, %v1107, %v1114
        %v1116 = vrot.slane %v1111, 4
        %v1118 = vshrl.u32 %v950, 16
        %v1120 = vrot.slane %v1118, 7
        %v1121 = vshll.u32 %v950, 16
        %v1123 = vor.u32 %v1120, %v1121
        %v1124 = vsel %vm964, %v1116, %v1123
        %vm1143 = vcmask 1043456
        %vm1144 = vsmask.f32 7938
        %vm1145 = vmand %vm1143, %vm1144
        %v1146 = vld [vmem:[#allocation2] sm:$0xf]
        %v1147 = vsel %vm1145, %v971, %v1146
        %1148 = vst [vmem:[#allocation2] sm:$0xf] %v1147
        %1149 = vst [vmem:[#allocation2 + $0x4] sm:$0xf] %v980
        %1150 = vst [vmem:[#allocation2 + $0x8] sm:$0xf] %v989
        %1151 = vst [vmem:[#allocation2 + $0xc] sm:$0xf] %v998
        %1152 = vst [vmem:[#allocation2 + $0x10] sm:$0xf] %v1007
        %1153 = vst [vmem:[#allocation2 + $0x14] sm:$0xf] %v1016
        %1154 = vst [vmem:[#allocation2 + $0x18] sm:$0xf] %v1025
        %1155 = vst [vmem:[#allocation2 + $0x1c] sm:$0xf] %v1034
        %1156 = vst [vmem:[#allocation2 + $0x20] sm:$0xf] %v1043
        %1157 = vst [vmem:[#allocation2 + $0x24] sm:$0xf] %v1052
        %1158 = vst [vmem:[#allocation2 + $0x28] sm:$0xf] %v1061
        %1159 = vst [vmem:[#allocation2 + $0x2c] sm:$0xf] %v1070
        %1160 = vst [vmem:[#allocation2 + $0x30] sm:$0xf] %v1079
        %1161 = vst [vmem:[#allocation2 + $0x34] sm:$0xf] %v1088
        %1162 = vst [vmem:[#allocation2 + $0x38] sm:$0xf] %v1097
        %1163 = vst [vmem:[#allocation2 + $0x3c] sm:$0xf] %v1106
        %1164 = vst [vmem:[#allocation2 + $0x40] sm:$0xf] %v1115
        %vm1165 = vsmask.f32 3328
        %vm1166 = vmand %vm1143, %vm1165
        %v1167 = vld [vmem:[#allocation2 + $0x44] sm:$0xf]
        %v1168 = vsel %vm1166, %v1124, %v1167
        %1169 = vst [vmem:[#allocation2 + $0x44] sm:$0xf] %v1168
        %v1170 = vld [vmem:[#allocation2] sm:$0xf]
        %v1171 = vld [vmem:[#allocation2 + $0x4] sm:$0xf]
        %v1172 = vld [vmem:[#allocation2 + $0x8] sm:$0xf]
        %v1173 = vld [vmem:[#allocation2 + $0xc] sm:$0xf]
        %v1174 = vld [vmem:[#allocation2 + $0x10] sm:$0xf]
        %v1175 = vld [vmem:[#allocation2 + $0x14] sm:$0xf]
        %v1176 = vld [vmem:[#allocation2 + $0x18] sm:$0xf]
        %v1177 = vld [vmem:[#allocation2 + $0x1c] sm:$0xf]
        %v1178 = vld [vmem:[#allocation2 + $0x20] sm:$0xf]
        %v1179 = vld [vmem:[#allocation2 + $0x24] sm:$0xf]
        %v1180 = vld [vmem:[#allocation2 + $0x28] sm:$0xf]
        %v1181 = vld [vmem:[#allocation2 + $0x2c] sm:$0xf]
        %v1182 = vld [vmem:[#allocation2 + $0x30] sm:$0xf]
        %v1183 = vld [vmem:[#allocation2 + $0x34] sm:$0xf]
        %v1184 = vld [vmem:[#allocation2 + $0x38] sm:$0xf]
        %v1185 = vld [vmem:[#allocation2 + $0x3c] sm:$0xf]
        %v1186 = vld [vmem:[#allocation2 + $0x40] sm:$0xf]
        %v1187 = vld [vmem:[#allocation2 + $0x44] sm:$0x7]
        %v1188 = vld [vmem:[%s4] sm:$0xf]
        %v1189 = vld [vmem:[%s4 + $0x4] sm:$0xf]
        %v1190 = vld [vmem:[%s4 + $0x8] sm:$0xf]
        %v1191 = vld [vmem:[%s4 + $0xc] sm:$0xf]
        %v1192 = vld [vmem:[%s4 + $0x10] sm:$0xf]
        %v1193 = vld [vmem:[%s4 + $0x14] sm:$0xf]
        %v1194 = vld [vmem:[%s4 + $0x18] sm:$0xf]
        %v1195 = vld [vmem:[%s4 + $0x1c] sm:$0xf]
        %v1196 = vld [vmem:[%s4 + $0x20] sm:$0xf]
        %v1197 = vld [vmem:[%s4 + $0x24] sm:$0xf]
        %v1198 = vld [vmem:[%s4 + $0x28] sm:$0xf]
        %v1199 = vld [vmem:[%s4 + $0x2c] sm:$0xf]
        %v1200 = vld [vmem:[%s4 + $0x30] sm:$0xf]
        %v1201 = vld [vmem:[%s4 + $0x34] sm:$0xf]
        %v1202 = vld [vmem:[%s4 + $0x38] sm:$0xf]
        %v1203 = vld [vmem:[%s4 + $0x3c] sm:$0xf]
        %v1204 = vld [vmem:[#allocation2 + $0x44] sm:$0xf]
        %s1205 = scalar_lea.vmem %s4, 64
        %v1206 = vld [vmem:[%s1205] sm:$0xf]
        %v1207 = vld [vmem:[%s1205 + $0x4] sm:$0xf]
        %v1208 = vld [vmem:[%s1205 + $0x8] sm:$0xf]
        %v1209 = vld [vmem:[%s1205 + $0xc] sm:$0xf]
        %v1210 = vld [vmem:[%s1205 + $0x10] sm:$0xf]
        %v1211 = vld [vmem:[%s1205 + $0x14] sm:$0xf]
        %v1212 = vld [vmem:[%s1205 + $0x18] sm:$0xf]
        %v1213 = vld [vmem:[%s1205 + $0x1c] sm:$0xf]
        %v1214 = vld [vmem:[%s1205 + $0x20] sm:$0xf]
        %v1215 = vld [vmem:[%s1205 + $0x24] sm:$0xf]
        %v1216 = vld [vmem:[%s1205 + $0x28] sm:$0xf]
        %v1217 = vld [vmem:[%s1205 + $0x2c] sm:$0xf]
        %v1218 = vld [vmem:[%s1205 + $0x30] sm:$0xf]
        %v1219 = vld [vmem:[%s1205 + $0x34] sm:$0xf]
        %v1220 = vld [vmem:[%s1205 + $0x38] sm:$0xf]
        %v1221 = vld [vmem:[%s1205 + $0x3c] sm:$0xf]
        %v1240 = vunpack.c.l.b16 %v1170
        %v1241 = vunpack.c.l.b16 %v1171
        %v1242 = vunpack.c.l.b16 %v1172
        %v1243 = vunpack.c.l.b16 %v1173
        %v1244 = vunpack.c.l.b16 %v1174
        %v1245 = vunpack.c.l.b16 %v1175
        %v1246 = vunpack.c.l.b16 %v1176
        %v1247 = vunpack.c.l.b16 %v1177
        %v1248 = vunpack.c.l.b16 %v1178
        %v1249 = vunpack.c.l.b16 %v1179
        %v1250 = vunpack.c.l.b16 %v1180
        %v1251 = vunpack.c.l.b16 %v1181
        %v1252 = vunpack.c.l.b16 %v1182
        %v1253 = vunpack.c.l.b16 %v1183
        %v1254 = vunpack.c.l.b16 %v1184
        %v1255 = vunpack.c.l.b16 %v1185
        %v1256 = vunpack.c.l.b16 %v1186
        %v1257 = vunpack.c.l.b16 %v1204
        %v1258 = vpack.c.b16 %v1241, %v1240
        %v1259 = vpack.c.b16 %v1243, %v1242
        %v1260 = vpack.c.b16 %v1245, %v1244
        %v1261 = vpack.c.b16 %v1247, %v1246
        %v1262 = vpack.c.b16 %v1249, %v1248
        %v1263 = vpack.c.b16 %v1251, %v1250
        %v1264 = vpack.c.b16 %v1253, %v1252
        %v1265 = vpack.c.b16 %v1255, %v1254
        %v1266 = vpack.c.b16 %v1257, %v1256
        %v1268 = vshrl.u32 %v1258, 16
        %v1270 = vshll.u32 %v1258, 16
        %v1272 = vrot.slane %v1270, 1
        %v1273 = vor.u32 %v1268, %v1272
        %v1275 = vshll.u32 %v1259, 16
        %v1277 = vrot.slane %v1275, 1
        %v1278 = vsel %vm335, %v1273, %v1277
        %v1279 = vshrl.u32 %v1259, 16
        %v1281 = vor.u32 %v1279, %v1277
        %v1283 = vshll.u32 %v1260, 16
        %v1285 = vrot.slane %v1283, 1
        %v1286 = vsel %vm335, %v1281, %v1285
        %v1287 = vshrl.u32 %v1260, 16
        %v1289 = vor.u32 %v1287, %v1285
        %v1291 = vshll.u32 %v1261, 16
        %v1293 = vrot.slane %v1291, 1
        %v1294 = vsel %vm335, %v1289, %v1293
        %v1295 = vshrl.u32 %v1261, 16
        %v1297 = vor.u32 %v1295, %v1293
        %v1299 = vshll.u32 %v1262, 16
        %v1301 = vrot.slane %v1299, 1
        %v1302 = vsel %vm335, %v1297, %v1301
        %v1303 = vshrl.u32 %v1262, 16
        %v1305 = vor.u32 %v1303, %v1301
        %v1307 = vshll.u32 %v1263, 16
        %v1309 = vrot.slane %v1307, 1
        %v1310 = vsel %vm335, %v1305, %v1309
        %v1311 = vshrl.u32 %v1263, 16
        %v1313 = vor.u32 %v1311, %v1309
        %v1315 = vshll.u32 %v1264, 16
        %v1317 = vrot.slane %v1315, 1
        %v1318 = vsel %vm335, %v1313, %v1317
        %v1319 = vshrl.u32 %v1264, 16
        %v1321 = vor.u32 %v1319, %v1317
        %v1323 = vshll.u32 %v1265, 16
        %v1325 = vrot.slane %v1323, 1
        %v1326 = vsel %vm335, %v1321, %v1325
        %v1327 = vshrl.u32 %v1265, 16
        %v1329 = vor.u32 %v1327, %v1325
        %v1331 = vshll.u32 %v1266, 16
        %v1333 = vrot.slane %v1331, 1
        %v1334 = vsel %vm335, %v1329, %v1333
        %v1335 = vshrl.u32 %v1266, 16
        %v1337 = vor.u32 %v1335, %v1333
        %v1363 = vunpack.c.l.b16 %v1206
        %v1364 = vunpack.c.l.b16 %v1207
        %v1365 = vunpack.c.l.b16 %v1208
        %v1366 = vunpack.c.l.b16 %v1209
        %v1367 = vunpack.c.l.b16 %v1210
        %v1368 = vunpack.c.l.b16 %v1211
        %v1369 = vunpack.c.l.b16 %v1212
        %v1370 = vunpack.c.l.b16 %v1213
        %v1371 = vunpack.c.l.b16 %v1214
        %v1372 = vunpack.c.l.b16 %v1215
        %v1373 = vunpack.c.l.b16 %v1216
        %v1374 = vunpack.c.l.b16 %v1217
        %v1375 = vunpack.c.l.b16 %v1218
        %v1376 = vunpack.c.l.b16 %v1219
        %v1377 = vunpack.c.l.b16 %v1220
        %v1378 = vunpack.c.l.b16 %v1221
        %v1379 = vpack.c.b16 %v1364, %v1363
        %v1380 = vpack.c.b16 %v1366, %v1365
        %v1381 = vpack.c.b16 %v1368, %v1367
        %v1382 = vpack.c.b16 %v1370, %v1369
        %v1383 = vpack.c.b16 %v1372, %v1371
        %v1384 = vpack.c.b16 %v1374, %v1373
        %v1385 = vpack.c.b16 %v1376, %v1375
        %v1386 = vpack.c.b16 %v1378, %v1377
        %1395 = vmatpush.bf16.msra.mxu0 %v1386
        %1396 = vmatpush.bf16.msra.mxu0 %v1385
        %1397 = vmatpush.bf16.msra.mxu0 %v1384
        %1398 = vmatpush.bf16.msra.mxu0 %v1383
        %1399 = vmatpush.bf16.msra.mxu0 %v1382
        %1400 = vmatpush.bf16.msra.mxu0 %v1381
        %1401 = vmatpush.bf16.msra.mxu0 %v1380
        %1402 = vmatpush.bf16.msra.mxu0 %v1379
        %1403 = vmatmul.bf16.gmra.mxu0 %v1278
        %v1404 = vpop.f32.mrf.mxu0
        %v1405 = vadd.f32 0.0, %v1404
        %v1406 = vpop.f32.mrf.mxu0
        %v1407 = vadd.f32 0.0, %v1406
        %1408 = vmatmul.bf16.gmra.mxu0 %v1286
        %v1409 = vpop.f32.mrf.mxu0
        %v1410 = vadd.f32 0.0, %v1409
        %v1411 = vpop.f32.mrf.mxu0
        %v1412 = vadd.f32 0.0, %v1411
        %1413 = vmatmul.bf16.gmra.mxu0 %v1294
        %v1414 = vpop.f32.mrf.mxu0
        %v1415 = vadd.f32 0.0, %v1414
        %v1416 = vpop.f32.mrf.mxu0
        %v1417 = vadd.f32 0.0, %v1416
        %1418 = vmatmul.bf16.gmra.mxu0 %v1302
        %v1419 = vpop.f32.mrf.mxu0
        %v1420 = vadd.f32 0.0, %v1419
        %v1421 = vpop.f32.mrf.mxu0
        %v1422 = vadd.f32 0.0, %v1421
        %1423 = vmatmul.bf16.gmra.mxu0 %v1310
        %v1424 = vpop.f32.mrf.mxu0
        %v1425 = vadd.f32 0.0, %v1424
        %v1426 = vpop.f32.mrf.mxu0
        %v1427 = vadd.f32 0.0, %v1426
        %1428 = vmatmul.bf16.gmra.mxu0 %v1318
        %v1429 = vpop.f32.mrf.mxu0
        %v1430 = vadd.f32 0.0, %v1429
        %v1431 = vpop.f32.mrf.mxu0
        %v1432 = vadd.f32 0.0, %v1431
        %1433 = vmatmul.bf16.gmra.mxu0 %v1326
        %v1434 = vpop.f32.mrf.mxu0
        %v1435 = vadd.f32 0.0, %v1434
        %v1436 = vpop.f32.mrf.mxu0
        %v1437 = vadd.f32 0.0, %v1436
        %1438 = vmatmul.bf16.gmra.mxu0 %v1334
        %v1439 = vpop.f32.mrf.mxu0
        %v1440 = vadd.f32 0.0, %v1439
        %v1441 = vpop.f32.mrf.mxu0
        %v1442 = vadd.f32 0.0, %v1441
        %1443 = vmatmul.bf16.gmra.mxu0 %v1337
        %v1444 = vpop.f32.mrf.mxu0
        %v1445 = vadd.f32 0.0, %v1444
        %v1446 = vpop.f32.mrf.mxu0
        %v1447 = vadd.f32 0.0, %v1446
        %1448 = vdwg.mxu0
        %v1450 = vunpack.c.l.b16 %v1187
        %v1451 = vpack.c.b16 %v1450, %v1256
        %v1477 = vunpack.c.l.b16 %v1188
        %v1478 = vunpack.c.l.b16 %v1189
        %v1479 = vunpack.c.l.b16 %v1190
        %v1480 = vunpack.c.l.b16 %v1191
        %v1481 = vunpack.c.l.b16 %v1192
        %v1482 = vunpack.c.l.b16 %v1193
        %v1483 = vunpack.c.l.b16 %v1194
        %v1484 = vunpack.c.l.b16 %v1195
        %v1485 = vunpack.c.l.b16 %v1196
        %v1486 = vunpack.c.l.b16 %v1197
        %v1487 = vunpack.c.l.b16 %v1198
        %v1488 = vunpack.c.l.b16 %v1199
        %v1489 = vunpack.c.l.b16 %v1200
        %v1490 = vunpack.c.l.b16 %v1201
        %v1491 = vunpack.c.l.b16 %v1202
        %v1492 = vunpack.c.l.b16 %v1203
        %v1493 = vpack.c.b16 %v1478, %v1477
        %v1494 = vpack.c.b16 %v1480, %v1479
        %v1495 = vpack.c.b16 %v1482, %v1481
        %v1496 = vpack.c.b16 %v1484, %v1483
        %v1497 = vpack.c.b16 %v1486, %v1485
        %v1498 = vpack.c.b16 %v1488, %v1487
        %v1499 = vpack.c.b16 %v1490, %v1489
        %v1500 = vpack.c.b16 %v1492, %v1491
        %1509 = vmatpush.bf16.msra.mxu0 %v1500
        %1510 = vmatpush.bf16.msra.mxu0 %v1499
        %1511 = vmatpush.bf16.msra.mxu0 %v1498
        %1512 = vmatpush.bf16.msra.mxu0 %v1497
        %1513 = vmatpush.bf16.msra.mxu0 %v1496
        %1514 = vmatpush.bf16.msra.mxu0 %v1495
        %1515 = vmatpush.bf16.msra.mxu0 %v1494
        %1516 = vmatpush.bf16.msra.mxu0 %v1493
        %1517 = vmatmul.bf16.gmra.mxu0 %v1258
        %v1518 = vpop.f32.mrf.mxu0
        %v1519 = vadd.f32 %v1405, %v1518
        %v1520 = vpop.f32.mrf.mxu0
        %v1521 = vadd.f32 %v1407, %v1520
        %1522 = vmatmul.bf16.gmra.mxu0 %v1259
        %v1523 = vpop.f32.mrf.mxu0
        %v1524 = vadd.f32 %v1410, %v1523
        %v1525 = vpop.f32.mrf.mxu0
        %v1526 = vadd.f32 %v1412, %v1525
        %1527 = vmatmul.bf16.gmra.mxu0 %v1260
        %v1528 = vpop.f32.mrf.mxu0
        %v1529 = vadd.f32 %v1415, %v1528
        %v1530 = vpop.f32.mrf.mxu0
        %v1531 = vadd.f32 %v1417, %v1530
        %1532 = vmatmul.bf16.gmra.mxu0 %v1261
        %v1533 = vpop.f32.mrf.mxu0
        %v1534 = vadd.f32 %v1420, %v1533
        %v1535 = vpop.f32.mrf.mxu0
        %v1536 = vadd.f32 %v1422, %v1535
        %1537 = vmatmul.bf16.gmra.mxu0 %v1262
        %v1538 = vpop.f32.mrf.mxu0
        %v1539 = vadd.f32 %v1425, %v1538
        %v1540 = vpop.f32.mrf.mxu0
        %v1541 = vadd.f32 %v1427, %v1540
        %1542 = vmatmul.bf16.gmra.mxu0 %v1263
        %v1543 = vpop.f32.mrf.mxu0
        %v1544 = vadd.f32 %v1430, %v1543
        %v1545 = vpop.f32.mrf.mxu0
        %v1546 = vadd.f32 %v1432, %v1545
        %1547 = vmatmul.bf16.gmra.mxu0 %v1264
        %v1548 = vpop.f32.mrf.mxu0
        %v1549 = vadd.f32 %v1435, %v1548
        %v1550 = vpop.f32.mrf.mxu0
        %v1551 = vadd.f32 %v1437, %v1550
        %1552 = vmatmul.bf16.gmra.mxu0 %v1265
        %v1553 = vpop.f32.mrf.mxu0
        %v1554 = vadd.f32 %v1440, %v1553
        %v1555 = vpop.f32.mrf.mxu0
        %v1556 = vadd.f32 %v1442, %v1555
        %1557 = vmatmul.bf16.gmra.mxu0 %v1451
        %v1558 = vpop.f32.mrf.mxu0
        %v1559 = vadd.f32 %v1445, %v1558
        %v1560 = vpop.f32.mrf.mxu0
        %v1561 = vadd.f32 %v1447, %v1560
        %1562 = vdwg.mxu0
        %v1563 = vld [vmem:[#allocation2] sm:$0xe]
        %s1564 = scalar_lea.vmem %s4, 128
        %v1565 = vld [vmem:[%s1564] sm:$0xf]
        %v1566 = vld [vmem:[%s1564 + $0x4] sm:$0xf]
        %v1567 = vld [vmem:[%s1564 + $0x8] sm:$0xf]
        %v1568 = vld [vmem:[%s1564 + $0xc] sm:$0xf]
        %v1569 = vld [vmem:[%s1564 + $0x10] sm:$0xf]
        %v1570 = vld [vmem:[%s1564 + $0x14] sm:$0xf]
        %v1571 = vld [vmem:[%s1564 + $0x18] sm:$0xf]
        %v1572 = vld [vmem:[%s1564 + $0x1c] sm:$0xf]
        %v1573 = vld [vmem:[%s1564 + $0x20] sm:$0xf]
        %v1574 = vld [vmem:[%s1564 + $0x24] sm:$0xf]
        %v1575 = vld [vmem:[%s1564 + $0x28] sm:$0xf]
        %v1576 = vld [vmem:[%s1564 + $0x2c] sm:$0xf]
        %v1577 = vld [vmem:[%s1564 + $0x30] sm:$0xf]
        %v1578 = vld [vmem:[%s1564 + $0x34] sm:$0xf]
        %v1579 = vld [vmem:[%s1564 + $0x38] sm:$0xf]
        %v1580 = vld [vmem:[%s1564 + $0x3c] sm:$0xf]
        %v1582 = vunpack.c.l.b16 %v1563
        %v1583 = vpack.c.b16 %v1241, %v1582
        %v1584 = vrot.slane %v1583, 1
        %v1585 = vrot.slane %v1259, 1
        %v1586 = vsel %vm626, %v1584, %v1585
        %v1587 = vrot.slane %v1260, 1
        %v1588 = vsel %vm626, %v1585, %v1587
        %v1589 = vrot.slane %v1261, 1
        %v1590 = vsel %vm626, %v1587, %v1589
        %v1591 = vrot.slane %v1262, 1
        %v1592 = vsel %vm626, %v1589, %v1591
        %v1593 = vrot.slane %v1263, 1
        %v1594 = vsel %vm626, %v1591, %v1593
        %v1595 = vrot.slane %v1264, 1
        %v1596 = vsel %vm626, %v1593, %v1595
        %v1597 = vrot.slane %v1265, 1
        %v1598 = vsel %vm626, %v1595, %v1597
        %v1599 = vrot.slane %v1266, 1
        %v1600 = vsel %vm626, %v1597, %v1599
        %v1626 = vunpack.c.l.b16 %v1565
        %v1627 = vunpack.c.l.b16 %v1566
        %v1628 = vunpack.c.l.b16 %v1567
        %v1629 = vunpack.c.l.b16 %v1568
        %v1630 = vunpack.c.l.b16 %v1569
        %v1631 = vunpack.c.l.b16 %v1570
        %v1632 = vunpack.c.l.b16 %v1571
        %v1633 = vunpack.c.l.b16 %v1572
        %v1634 = vunpack.c.l.b16 %v1573
        %v1635 = vunpack.c.l.b16 %v1574
        %v1636 = vunpack.c.l.b16 %v1575
        %v1637 = vunpack.c.l.b16 %v1576
        %v1638 = vunpack.c.l.b16 %v1577
        %v1639 = vunpack.c.l.b16 %v1578
        %v1640 = vunpack.c.l.b16 %v1579
        %v1641 = vunpack.c.l.b16 %v1580
        %v1642 = vpack.c.b16 %v1627, %v1626
        %v1643 = vpack.c.b16 %v1629, %v1628
        %v1644 = vpack.c.b16 %v1631, %v1630
        %v1645 = vpack.c.b16 %v1633, %v1632
        %v1646 = vpack.c.b16 %v1635, %v1634
        %v1647 = vpack.c.b16 %v1637, %v1636
        %v1648 = vpack.c.b16 %v1639, %v1638
        %v1649 = vpack.c.b16 %v1641, %v1640
        %1658 = vmatpush.bf16.msra.mxu0 %v1649
        %1659 = vmatpush.bf16.msra.mxu0 %v1648
        %1660 = vmatpush.bf16.msra.mxu0 %v1647
        %1661 = vmatpush.bf16.msra.mxu0 %v1646
        %1662 = vmatpush.bf16.msra.mxu0 %v1645
        %1663 = vmatpush.bf16.msra.mxu0 %v1644
        %1664 = vmatpush.bf16.msra.mxu0 %v1643
        %1665 = vmatpush.bf16.msra.mxu0 %v1642
        %1666 = vmatmul.bf16.gmra.mxu0 %v1586
        %v1667 = vpop.f32.mrf.mxu0
        %v1668 = vadd.f32 0.0, %v1667
        %v1669 = vpop.f32.mrf.mxu0
        %v1670 = vadd.f32 0.0, %v1669
        %1671 = vmatmul.bf16.gmra.mxu0 %v1588
        %v1672 = vpop.f32.mrf.mxu0
        %v1673 = vadd.f32 0.0, %v1672
        %v1674 = vpop.f32.mrf.mxu0
        %v1675 = vadd.f32 0.0, %v1674
        %1676 = vmatmul.bf16.gmra.mxu0 %v1590
        %v1677 = vpop.f32.mrf.mxu0
        %v1678 = vadd.f32 0.0, %v1677
        %v1679 = vpop.f32.mrf.mxu0
        %v1680 = vadd.f32 0.0, %v1679
        %1681 = vmatmul.bf16.gmra.mxu0 %v1592
        %v1682 = vpop.f32.mrf.mxu0
        %v1683 = vadd.f32 0.0, %v1682
        %v1684 = vpop.f32.mrf.mxu0
        %v1685 = vadd.f32 0.0, %v1684
        %1686 = vmatmul.bf16.gmra.mxu0 %v1594
        %v1687 = vpop.f32.mrf.mxu0
        %v1688 = vadd.f32 0.0, %v1687
        %v1689 = vpop.f32.mrf.mxu0
        %v1690 = vadd.f32 0.0, %v1689
        %1691 = vmatmul.bf16.gmra.mxu0 %v1596
        %v1692 = vpop.f32.mrf.mxu0
        %v1693 = vadd.f32 0.0, %v1692
        %v1694 = vpop.f32.mrf.mxu0
        %v1695 = vadd.f32 0.0, %v1694
        %1696 = vmatmul.bf16.gmra.mxu0 %v1598
        %v1697 = vpop.f32.mrf.mxu0
        %v1698 = vadd.f32 0.0, %v1697
        %v1699 = vpop.f32.mrf.mxu0
        %v1700 = vadd.f32 0.0, %v1699
        %1701 = vmatmul.bf16.gmra.mxu0 %v1600
        %v1702 = vpop.f32.mrf.mxu0
        %v1703 = vadd.f32 0.0, %v1702
        %v1704 = vpop.f32.mrf.mxu0
        %v1705 = vadd.f32 0.0, %v1704
        %1706 = vmatmul.bf16.gmra.mxu0 %v1599
        %v1707 = vpop.f32.mrf.mxu0
        %v1708 = vadd.f32 0.0, %v1707
        %v1709 = vpop.f32.mrf.mxu0
        %v1710 = vadd.f32 0.0, %v1709
        %1711 = vdwg.mxu0
        %v1712 = vadd.f32 %v1519, %v1668
        %v1713 = vadd.f32 %v1521, %v1670
        %v1714 = vadd.f32 %v1524, %v1673
        %v1715 = vadd.f32 %v1526, %v1675
        %v1716 = vadd.f32 %v1529, %v1678
        %v1717 = vadd.f32 %v1531, %v1680
        %v1718 = vadd.f32 %v1534, %v1683
        %v1719 = vadd.f32 %v1536, %v1685
        %v1720 = vadd.f32 %v1539, %v1688
        %v1721 = vadd.f32 %v1541, %v1690
        %v1722 = vadd.f32 %v1544, %v1693
        %v1723 = vadd.f32 %v1546, %v1695
        %v1724 = vadd.f32 %v1549, %v1698
        %v1725 = vadd.f32 %v1551, %v1700
        %v1726 = vadd.f32 %v1554, %v1703
        %v1727 = vadd.f32 %v1556, %v1705
        %v1728 = vadd.f32 %v1559, %v1708
        %v1729 = vadd.f32 %v1561, %v1710
        %v1730 = vld [vmem:[%s5] sm:$0x1]
        %v1732 = vperm.slane %v1730, 0
        %v1734 = vadd.f32 %v1712, %v1732
        %v1735 = vadd.f32 %v1713, %v1732
        %v1736 = vadd.f32 %v1714, %v1732
        %v1737 = vadd.f32 %v1715, %v1732
        %v1738 = vadd.f32 %v1716, %v1732
        %v1739 = vadd.f32 %v1717, %v1732
        %v1740 = vadd.f32 %v1718, %v1732
        %v1741 = vadd.f32 %v1719, %v1732
        %v1742 = vadd.f32 %v1720, %v1732
        %v1743 = vadd.f32 %v1721, %v1732
        %v1744 = vadd.f32 %v1722, %v1732
        %v1745 = vadd.f32 %v1723, %v1732
        %v1746 = vadd.f32 %v1724, %v1732
        %v1747 = vadd.f32 %v1725, %v1732
        %v1748 = vadd.f32 %v1726, %v1732
        %v1749 = vadd.f32 %v1727, %v1732
        %v1750 = vadd.f32 %v1728, %v1732
        %v1751 = vadd.f32 %v1729, %v1732
        %v1752 = vmax.f32 %v1734, 0.0
        %v1753 = vmax.f32 %v1735, 0.0
        %v1754 = vmax.f32 %v1736, 0.0
        %v1755 = vmax.f32 %v1737, 0.0
        %v1756 = vmax.f32 %v1738, 0.0
        %v1757 = vmax.f32 %v1739, 0.0
        %v1758 = vmax.f32 %v1740, 0.0
        %v1759 = vmax.f32 %v1741, 0.0
        %v1760 = vmax.f32 %v1742, 0.0
        %v1761 = vmax.f32 %v1743, 0.0
        %v1762 = vmax.f32 %v1744, 0.0
        %v1763 = vmax.f32 %v1745, 0.0
        %v1764 = vmax.f32 %v1746, 0.0
        %v1765 = vmax.f32 %v1747, 0.0
        %v1766 = vmax.f32 %v1748, 0.0
        %v1767 = vmax.f32 %v1749, 0.0
        %v1768 = vmax.f32 %v1750, 0.0
        %v1769 = vmax.f32 %v1751, 0.0
        %1770 = vst [vmem:[%s245] sm:$0xff] %v1752
        %1771 = vst [vmem:[%s245 + $0x8] sm:$0xff] %v1753
        %1772 = vst [vmem:[%s245 + $0x10] sm:$0xff] %v1754
        %1773 = vst [vmem:[%s245 + $0x18] sm:$0xff] %v1755
        %1774 = vst [vmem:[%s245 + $0x20] sm:$0xff] %v1756
        %1775 = vst [vmem:[%s245 + $0x28] sm:$0xff] %v1757
        %1776 = vst [vmem:[%s245 + $0x30] sm:$0xff] %v1758
        %1777 = vst [vmem:[%s245 + $0x38] sm:$0xff] %v1759
        %1778 = vst [vmem:[%s245 + $0x40] sm:$0xff] %v1760
        %1779 = vst [vmem:[%s245 + $0x48] sm:$0xff] %v1761
        %1780 = vst [vmem:[%s245 + $0x50] sm:$0xff] %v1762
        %1781 = vst [vmem:[%s245 + $0x58] sm:$0xff] %v1763
        %1782 = vst [vmem:[%s245 + $0x60] sm:$0xff] %v1764
        %1783 = vst [vmem:[%s245 + $0x68] sm:$0xff] %v1765
        %1784 = vst [vmem:[%s245 + $0x70] sm:$0xff] %v1766
        %1785 = vst [vmem:[%s245 + $0x78] sm:$0xff] %v1767
        %1786 = vst [vmem:[%s245 + $0x80] sm:$0xff] %v1768
        %1787 = vst [vmem:[%s245 + $0x88] sm:$0x3f] %v1769
        %1788 = vst [vmem:[%s245 + $0x8e] sm:$0x3] 0.0
        %s1789 = sand.u32 %s159, 1
        %s1790 = scalar_lea.sflag [#allocation4], %s1789
        %s1791 = sand.u32 %s159, 1
        %s1792 = smul.addr %s1791, 144
        %s1793 = scalar_lea.vmem [#allocation3], %s1792
        // Predicated region
        $region45: #{tpu_custom_call.1} parent=43 // pred_check
          %p1794 = pneg %p169
        $region46: #{tpu_custom_call.1} parent=43 // pred_check_branch
          %1796 = sbr.rel (%p1794) target = $region48
        $region47: #{tpu_custom_call.1} parent=43 // pred_region
          %s1797 = smul.u32 18, %s20
          %1799 = vsyncadd %s1790, 0
          %s1800 = smul.addr %s1797, 8
          %s1801 = scalar_lea.hbm %s6, %s1800
          %s1802 = sshll.u32 %s1793, 4
          %s1803 = int_to_ptr.vmem [resolvable:$true] %s1802
          %s1804 = sshll.u32 %s1801, 4
          %s1805 = int_to_ptr.hbm [resolvable:$true] %s1804
          %1810 = dma.vmem_to_hbm [thread:$0]  %s1803, 2304, %s1805, %s1790, 128, 128, 8
        $region48: #{tpu_custom_call.1} parent=43 // pred_fallthru
          _
      $region44: #{tpu_custom_call.1} parent=5 // pred_fallthru
        _
      %p1811 = scmp.le.s32.totalorder 2, %s15
      // Predicated region
      $region49: #{tpu_custom_call.1} parent=5 // pred_check
        %p1812 = pneg %p1811
      $region50: #{tpu_custom_call.1} parent=5 // pred_check_branch
        %1814 = sbr.rel (%p1812) target = $region52
      $region51: #{tpu_custom_call.1} parent=5 // pred_region
        %s1815 = ssub.s32 %s15, 2
        // Predicated region
        $region53: #{tpu_custom_call.1} parent=51 // pred_check
          %p1816 = pneg %p175
        $region54: #{tpu_custom_call.1} parent=51 // pred_check_branch
          %1818 = sbr.rel (%p1816) target = $region56
        $region55: #{tpu_custom_call.1} parent=51 // pred_region
          %s1819 = sand.u32 %s160, 1
          %s1820 = scalar_lea.sflag [#allocation4], %s1819
          %s1821 = sand.u32 %s160, 1
          %s1822 = smul.addr %s1821, 144
          %s1823 = scalar_lea.vmem [#allocation3], %s1822
          %1825 = dma.done %s1820, 2304
        $region56: #{tpu_custom_call.1} parent=51 // pred_fallthru
          _
      $region52: #{tpu_custom_call.1} parent=5 // pred_fallthru
        _
    $region6: #{tpu_custom_call.1} parent=1 // loop_footer
      %s19 = sadd.s32 1, %s15
    $region7: #{tpu_custom_call.1} parent=1 // loop_footer_branch
      %14 = sbr.rel target = $region3
    $region8: #{tpu_custom_call.1} parent=1 // loop_exit
      _
    %1826 = vsyncpa [#allocation4], 1
    %s1827 = scalar_lea.sflag [#allocation4], 1
    %1828 = vsyncpa %s1827, 1

</llo_original>
